<compile_context>
chip_gen: v5e
topology: v5e:2x2
jax: 0.10.0
libtpu: 0.0.40
codegen_flags: <defaults>
</compile_context>

<pallas_src>
import functools

import jax
import jax.numpy as jnp
from jax import lax
from jax.experimental import pallas as pl
from jax.experimental.pallas import tpu as pltpu

INPUT_SIZE = 4
HIDDEN = 10
KSIZE = 9
PAD = (KSIZE - 1) // 2
OUT_FEATURES = 4
BP = 8  # padded rows per timestep (sublane-aligned); B valid + (BP-B) dead


def small_lstm_kernel(x_ref, wih0w_ref, bfull_ref, l0mask_ref, wblock_ref,
                      convw_ref, convb_ref, linw_ref, linb_ref,
                      out_ref, s1, *, T, Bp):
    """Fused 2-layer LSTM (wavefront) + Conv1d + ReLU + Linear.

    x_ref:      ((T+1)*Bp, IN)   time-major input, one extra zero wave block
    wih0w_ref:  (IN, 8H) bf16    layer-0 input proj in gate-interleaved cols
    bfull_ref:  (1, 8H)  f32     combined biases (layer-0 | layer-1), g doubled
    l0mask_ref: (1, 8H)  f32     1.0 on layer-0 gate columns, 0.0 on layer-1
    wblock_ref: (2H, 8H) bf16    [[whh0, wih1],[0, whh1]], gate-interleaved
    out_ref:    (T*Bp, OUT) f32
    s1:         ((T+2*PAD)*Bp, H) f32 conv staging buffer (time-padded)
    """
    H = HIDDEN
    H2 = 2 * H
    K = KSIZE
    pad = PAD

    wblock = wblock_ref[...]                       # (2H, 8H) bf16
    mask0 = l0mask_ref[...]                        # (1, 8H)

    # ---- hoisted input projection: ONE bf16 matmul over all T+1 wave blocks.
    # Gate columns are interleaved [i0 i1 f0 f1 g0 g1 o0 o1]; layer-1 columns
    # of wih0w are zero so they just pick up the layer-1 bias here.
    xp = jnp.dot(x_ref[...].astype(jnp.bfloat16), wih0w_ref[...],
                 preferred_element_type=jnp.float32) + bfull_ref[...]

    # ---- zero only the conv halo rows (interior fully overwritten below).
    zpad = jnp.zeros((pad * Bp, H), jnp.float32)
    s1[pl.ds(0, pad * Bp), :] = zpad
    s1[pl.ds((pad + T) * Bp, pad * Bp), :] = zpad

    # ---- wavefront-fused recurrence, fully unrolled over T+1 waves.
    # Carry entering wave s: hs = [h0_{s-1} | h1_{s-2}], cs = [c0_{s-1} | c1_{s-2}].
    # Wave s computes layer-0 step s and layer-1 step s-1 with one stacked dot.
    hs = jnp.zeros((Bp, H2), jnp.float32)
    cs = jnp.zeros((Bp, H2), jnp.float32)

    for s in range(T + 1):
        xb = xp[s * Bp:(s + 1) * Bp, :]            # (Bp, 8H)
        if s == 0:
            # h-state is zero -> no dot; zeroing the layer-1 gate columns keeps
            # the layer-1 state at exactly 0 (g = 2*sigmoid(0)-1 = 0).
            gates = xb * mask0
        else:
            gates = xb + jnp.dot(hs.astype(jnp.bfloat16), wblock,
                                 preferred_element_type=jnp.float32)
        sig = jax.nn.sigmoid(gates)                # one EUP pass over (Bp, 8H)
        i_g = sig[:, 0 * H2:1 * H2]                # [i0 | i1]
        f_g = sig[:, 1 * H2:2 * H2]                # [f0 | f1]
        g_g = 2.0 * sig[:, 2 * H2:3 * H2] - 1.0    # tanh via 2*sigmoid(2x)-1
        o_g = sig[:, 3 * H2:4 * H2]                # [o0 | o1]
        cs = f_g * cs + i_g * g_g                  # stacked [c0 | c1]
        hs = o_g * jnp.tanh(cs)                    # one EUP pass over (Bp, 2H)
        if s >= 1:
            # layer-1 output for timestep s-1 -> conv staging (8-row aligned)
            s1[pl.ds((s - 1 + pad) * Bp, Bp), :] = hs[:, H:H2]

    # ---- Conv1d(k=9, pad=4, stride=1) as ONE (T*Bp, K*H) x (K*H, H) matmul.
    taps = jnp.concatenate(
        [s1[pl.ds(k * Bp, T * Bp), :] for k in range(K)], axis=1)   # (T*Bp, K*H)
    conv = jnp.dot(taps, convw_ref[...],
                   preferred_element_type=jnp.float32) + convb_ref[...]

    # ---- ReLU + Linear epilogue.
    act = jnp.maximum(conv, 0.0)
    out_ref[...] = (jnp.dot(act, linw_ref[...],
                            preferred_element_type=jnp.float32) + linb_ref[...])


def small_lstm_forward(x, packed):
    """x: (B, T, INPUT_SIZE) float32 (batch_first, like the PyTorch module)."""
    B, T, _ = x.shape
    Bp = BP
    # time-major, batch padded to 8 sublanes, plus one trailing zero wave block
    xt = jnp.transpose(x, (1, 0, 2)).astype(jnp.float32)        # (T, B, IN)
    xt = jnp.pad(xt, ((0, 1), (0, Bp - B), (0, 0)))             # (T+1, Bp, IN)
    x2d = xt.reshape((T + 1) * Bp, INPUT_SIZE)

    args = (x2d, packed['wih0_wide'], packed['b_full'], packed['l0mask'],
            packed['wblock'], packed['convw_flat'], packed['convb'],
            packed['linw_t'], packed['linb'])

    vmem = pl.BlockSpec(memory_space=pltpu.MemorySpace.VMEM)
    kernel = functools.partial(small_lstm_kernel, T=T, Bp=Bp)

    out = pl.pallas_call(
        kernel,
        out_shape=jax.ShapeDtypeStruct((T * Bp, OUT_FEATURES), jnp.float32),
        in_specs=[vmem] * len(args),
        out_specs=vmem,
        scratch_shapes=[
            pltpu.VMEM(((T + 2 * PAD) * Bp, HIDDEN), jnp.float32),  # conv staging
        ],
    )(*args)
    out = out.reshape(T, Bp, OUT_FEATURES)[:, :B, :]   # strip dead batch rows
    return jnp.transpose(out, (1, 0, 2))               # (B, T, OUT)


def init_params(key):
    """Deterministic synthetic parameters with PyTorch shapes/semantics."""
    H, IN = HIDDEN, INPUT_SIZE
    s = 1.0 / jnp.sqrt(jnp.float32(H))
    ks = jax.random.split(key, 12)

    def u(k, shape):
        return jax.random.uniform(k, shape, jnp.float32, -s, s)

    return dict(
        wih0=u(ks[0], (4 * H, IN)), whh0=u(ks[1], (4 * H, H)),
        bih0=u(ks[2], (4 * H,)), bhh0=u(ks[3], (4 * H,)),
        wih1=u(ks[4], (4 * H, H)), whh1=u(ks[5], (4 * H, H)),
        bih1=u(ks[6], (4 * H,)), bhh1=u(ks[7], (4 * H,)),
        convw=u(ks[8], (H, H, KSIZE)),            # (out_ch, in_ch, k) as PyTorch
        convb=u(ks[9], (H,)),
        linw=u(ks[10], (OUT_FEATURES, H)),        # (out, in) as PyTorch
        linb=u(ks[11], (OUT_FEATURES,)),
    )


def pack_params(p):
    """Build kernel-layout weights: gate-interleaved columns, g rows doubled."""
    H = HIDDEN

    def scale_g(w_t):  # w_t: (D, 4H) in (i, f, g, o) column blocks
        return jnp.concatenate(
            [w_t[:, :2 * H], 2.0 * w_t[:, 2 * H:3 * H], w_t[:, 3 * H:]], axis=1)

    def interleave(a, b):  # (D,4H),(D,4H) -> (D,8H) as [i0 i1 f0 f1 g0 g1 o0 o1]
        cols = []
        for g in range(4):
            cols += [a[:, g * H:(g + 1) * H], b[:, g * H:(g + 1) * H]]
        return jnp.concatenate(cols, axis=1)

    wih0_t = scale_g(p['wih0'].T)                     # (IN, 4H)
    whh0_t = scale_g(p['whh0'].T)                     # (H, 4H)
    wih1_t = scale_g(p['wih1'].T)                     # (H, 4H)
    whh1_t = scale_g(p['whh1'].T)                     # (H, 4H)
    b0 = scale_g((p['bih0'] + p['bhh0'])[None, :])    # (1, 4H)
    b1 = scale_g((p['bih1'] + p['bhh1'])[None, :])    # (1, 4H)

    zin = jnp.zeros_like(wih0_t)
    zh = jnp.zeros_like(whh1_t)
    ones4 = jnp.ones((1, 4 * H), jnp.float32)
    zeros4 = jnp.zeros((1, 4 * H), jnp.float32)

    return dict(
        wih0_wide=interleave(wih0_t, zin).astype(jnp.bfloat16),   # (IN, 8H)
        b_full=interleave(b0, b1),                                # (1, 8H)
        l0mask=interleave(ones4, zeros4),                         # (1, 8H)
        wblock=jnp.concatenate(
            [interleave(whh0_t, wih1_t), interleave(zh, whh1_t)],
            axis=0).astype(jnp.bfloat16),                         # (2H, 8H)
        convw_flat=jnp.transpose(p['convw'], (2, 1, 0)).reshape(KSIZE * H, H),
        convb=p['convb'][None, :],
        linw_t=p['linw'].T,
        linb=p['linb'][None, :],
    )


def reference_forward(x, p):
    """Pure-JAX reference with PyTorch semantics (uses the raw parameters)."""
    B, T, _ = x.shape
    H = HIDDEN

    def lstm_layer(inp, wih, whh, bih, bhh):
        wih_t, whh_t, b = wih.T, whh.T, bih + bhh

        def step(carry, x_t):
            h, c = carry
            gates = x_t @ wih_t + h @ whh_t + b
            i = jax.nn.sigmoid(gates[:, :H])
            f = jax.nn.sigmoid(gates[:, H:2 * H])
            g = jnp.tanh(gates[:, 2 * H:3 * H])
            o = jax.nn.sigmoid(gates[:, 3 * H:])
            c = f * c + i * g
            h = o * jnp.tanh(c)
            return (h, c), h

        h0 = jnp.zeros((B, H), jnp.float32)
        c0 = jnp.zeros((B, H), jnp.float32)
        _, hs = lax.scan(step, (h0, c0), jnp.transpose(inp, (1, 0, 2)))
        return jnp.transpose(hs, (1, 0, 2))           # (B, T, H)

    h = lstm_layer(x, p['wih0'], p['whh0'], p['bih0'], p['bhh0'])
    h = lstm_layer(h, p['wih1'], p['whh1'], p['bih1'], p['bhh1'])
    hp = jnp.pad(h, ((0, 0), (PAD, PAD), (0, 0)))
    conv = jnp.zeros((B, T, H), jnp.float32) + p['convb']
    for k in range(KSIZE):
        conv = conv + hp[:, k:k + T, :] @ p['convw'][:, :, k].T
    conv = jnp.maximum(conv, 0.0)
    return conv @ p['linw'].T + p['linb']


if __name__ == "__main__":
    key = jax.random.PRNGKey(0)
    pkey, xkey = jax.random.split(key)
    raw = init_params(pkey)
    packed = pack_params(raw)

    B, T = 2, 8
    x = jax.random.normal(xkey, (B, T, INPUT_SIZE), dtype=jnp.float32)

    out = jax.block_until_ready(small_lstm_forward(x, packed))
    assert out.shape == (B, T, OUT_FEATURES)

    ref = jax.block_until_ready(reference_forward(x, raw))
    # tolerance covers the bf16 single-pass MXU operands used for the fused
    # recurrent/input-projection dots (state & elementwise math stay f32).
    assert jnp.allclose(out, ref, atol=3e-2, rtol=3e-2), (
        f"max abs err {jnp.max(jnp.abs(out - ref))}")

    print("KERNEL_OK")
</pallas_src>

<mosaic_0001>
module attributes {stable_mosaic.version = 11 : i64} {
  func.func @small_lstm_kernel(%arg0: memref<72x4xf32, #tpu.memory_space<vmem>>, %arg1: memref<4x80xbf16, #tpu.memory_space<vmem>>, %arg2: memref<1x80xf32, #tpu.memory_space<vmem>>, %arg3: memref<1x80xf32, #tpu.memory_space<vmem>>, %arg4: memref<20x80xbf16, #tpu.memory_space<vmem>>, %arg5: memref<90x10xf32, #tpu.memory_space<vmem>>, %arg6: memref<1x10xf32, #tpu.memory_space<vmem>>, %arg7: memref<10x4xf32, #tpu.memory_space<vmem>>, %arg8: memref<1x4xf32, #tpu.memory_space<vmem>>, %arg9: memref<64x4xf32, #tpu.memory_space<vmem>>, %arg10: memref<128x10xf32, #tpu.memory_space<vmem>>) attributes {dimension_semantics = [], scalar_prefetch = 0 : i64, scratch_operands = 1 : i64, tpu.core_type = #tpu.core_type<tc>} {
    %c0 = arith.constant 0 : index
    %c0_0 = arith.constant 0 : index
    %0 = vector.load %arg4[%c0, %c0_0] : memref<20x80xbf16, #tpu.memory_space<vmem>>, vector<20x80xbf16>
    %c0_1 = arith.constant 0 : index
    %c0_2 = arith.constant 0 : index
    %1 = vector.load %arg3[%c0_1, %c0_2] : memref<1x80xf32, #tpu.memory_space<vmem>>, vector<1x80xf32>
    %c0_3 = arith.constant 0 : index
    %c0_4 = arith.constant 0 : index
    %2 = vector.load %arg0[%c0_3, %c0_4] : memref<72x4xf32, #tpu.memory_space<vmem>>, vector<72x4xf32>
    %3 = arith.truncf %2 : vector<72x4xf32> to vector<72x4xbf16>
    %c0_5 = arith.constant 0 : index
    %c0_6 = arith.constant 0 : index
    %4 = vector.load %arg1[%c0_5, %c0_6] : memref<4x80xbf16, #tpu.memory_space<vmem>>, vector<4x80xbf16>
    %cst = arith.constant dense<0.000000e+00> : vector<72x80xf32>
    %5 = tpu.matmul %3, %4, %cst {dimension_numbers = #tpu.dot_dimension_numbers<[1], [0], [0], [1], [0, 0, 1, 1], [], []>} : vector<72x4xbf16>, vector<4x80xbf16>, vector<72x80xf32> -> vector<72x80xf32>
    %c0_7 = arith.constant 0 : index
    %c0_8 = arith.constant 0 : index
    %6 = vector.load %arg2[%c0_7, %c0_8] : memref<1x80xf32, #tpu.memory_space<vmem>>, vector<1x80xf32>
    %7 = vector.broadcast %6 : vector<1x80xf32> to vector<72x80xf32>
    %8 = arith.addf %5, %7 : vector<72x80xf32>
    %cst_9 = arith.constant 0.000000e+00 : f32
    %9 = vector.broadcast %cst_9 : f32 to vector<32x10xf32>
    %c0_10 = arith.constant 0 : index
    %c0_11 = arith.constant 0 : index
    %10 = vector.load %arg10[%c0_10, %c0_11] : memref<128x10xf32, #tpu.memory_space<vmem>>, vector<32x10xf32>
    tpu.vector_store %arg10[%c0_10, %c0_11], %9 {strides = array<i32>} : memref<128x10xf32, #tpu.memory_space<vmem>>, vector<32x10xf32>,
    %c96 = arith.constant 96 : index
    %c0_12 = arith.constant 0 : index
    %11 = vector.load %arg10[%c96, %c0_12] : memref<128x10xf32, #tpu.memory_space<vmem>>, vector<32x10xf32>
    tpu.vector_store %arg10[%c96, %c0_12], %9 {strides = array<i32>} : memref<128x10xf32, #tpu.memory_space<vmem>>, vector<32x10xf32>,
    %cst_13 = arith.constant 0.000000e+00 : f32
    %12 = vector.broadcast %cst_13 : f32 to vector<8x20xf32>
    %13 = vector.extract_strided_slice %8 {offsets = [0, 0], sizes = [8, 80], strides = [1, 1]} : vector<72x80xf32> to vector<8x80xf32>
    %14 = vector.broadcast %1 : vector<1x80xf32> to vector<8x80xf32>
    %15 = arith.mulf %13, %14 : vector<8x80xf32>
    %16 = arith.negf %15 : vector<8x80xf32>
    %17 = math.exp %16 : vector<8x80xf32>
    %cst_14 = arith.constant 1.000000e+00 : f32
    %18 = vector.broadcast %cst_14 : f32 to vector<8x80xf32>
    %19 = arith.addf %18, %17 : vector<8x80xf32>
    %20 = arith.divf %18, %19 : vector<8x80xf32>
    %21 = vector.extract_strided_slice %20 {offsets = [0, 0], sizes = [8, 20], strides = [1, 1]} : vector<8x80xf32> to vector<8x20xf32>
    %22 = vector.extract_strided_slice %20 {offsets = [0, 20], sizes = [8, 20], strides = [1, 1]} : vector<8x80xf32> to vector<8x20xf32>
    %23 = vector.extract_strided_slice %20 {offsets = [0, 40], sizes = [8, 20], strides = [1, 1]} : vector<8x80xf32> to vector<8x20xf32>
    %cst_15 = arith.constant 2.000000e+00 : f32
    %24 = vector.broadcast %cst_15 : f32 to vector<8x20xf32>
    %25 = arith.mulf %24, %23 : vector<8x20xf32>
    %cst_16 = arith.constant 1.000000e+00 : f32
    %26 = vector.broadcast %cst_16 : f32 to vector<8x20xf32>
    %27 = arith.subf %25, %26 : vector<8x20xf32>
    %28 = vector.extract_strided_slice %20 {offsets = [0, 60], sizes = [8, 20], strides = [1, 1]} : vector<8x80xf32> to vector<8x20xf32>
    %29 = arith.mulf %22, %12 : vector<8x20xf32>
    %30 = arith.mulf %21, %27 : vector<8x20xf32>
    %31 = arith.addf %29, %30 : vector<8x20xf32>
    %32 = math.tanh %31 : vector<8x20xf32>
    %33 = arith.mulf %28, %32 : vector<8x20xf32>
    %34 = vector.extract_strided_slice %8 {offsets = [8, 0], sizes = [8, 80], strides = [1, 1]} : vector<72x80xf32> to vector<8x80xf32>
    %35 = arith.truncf %33 : vector<8x20xf32> to vector<8x20xbf16>
    %cst_17 = arith.constant dense<0.000000e+00> : vector<8x80xf32>
    %36 = tpu.matmul %35, %0, %cst_17 {dimension_numbers = #tpu.dot_dimension_numbers<[1], [0], [0], [1], [0, 0, 1, 1], [], []>} : vector<8x20xbf16>, vector<20x80xbf16>, vector<8x80xf32> -> vector<8x80xf32>
    %37 = arith.addf %34, %36 : vector<8x80xf32>
    %38 = arith.negf %37 : vector<8x80xf32>
    %39 = math.exp %38 : vector<8x80xf32>
    %cst_18 = arith.constant 1.000000e+00 : f32
    %40 = vector.broadcast %cst_18 : f32 to vector<8x80xf32>
    %41 = arith.addf %40, %39 : vector<8x80xf32>
    %42 = arith.divf %40, %41 : vector<8x80xf32>
    %43 = vector.extract_strided_slice %42 {offsets = [0, 0], sizes = [8, 20], strides = [1, 1]} : vector<8x80xf32> to vector<8x20xf32>
    %44 = vector.extract_strided_slice %42 {offsets = [0, 20], sizes = [8, 20], strides = [1, 1]} : vector<8x80xf32> to vector<8x20xf32>
    %45 = vector.extract_strided_slice %42 {offsets = [0, 40], sizes = [8, 20], strides = [1, 1]} : vector<8x80xf32> to vector<8x20xf32>
    %cst_19 = arith.constant 2.000000e+00 : f32
    %46 = vector.broadcast %cst_19 : f32 to vector<8x20xf32>
    %47 = arith.mulf %46, %45 : vector<8x20xf32>
    %cst_20 = arith.constant 1.000000e+00 : f32
    %48 = vector.broadcast %cst_20 : f32 to vector<8x20xf32>
    %49 = arith.subf %47, %48 : vector<8x20xf32>
    %50 = vector.extract_strided_slice %42 {offsets = [0, 60], sizes = [8, 20], strides = [1, 1]} : vector<8x80xf32> to vector<8x20xf32>
    %51 = arith.mulf %44, %31 : vector<8x20xf32>
    %52 = arith.mulf %43, %49 : vector<8x20xf32>
    %53 = arith.addf %51, %52 : vector<8x20xf32>
    %54 = math.tanh %53 : vector<8x20xf32>
    %55 = arith.mulf %50, %54 : vector<8x20xf32>
    %56 = vector.extract_strided_slice %55 {offsets = [0, 10], sizes = [8, 10], strides = [1, 1]} : vector<8x20xf32> to vector<8x10xf32>
    %c32 = arith.constant 32 : index
    %c0_21 = arith.constant 0 : index
    %57 = vector.load %arg10[%c32, %c0_21] : memref<128x10xf32, #tpu.memory_space<vmem>>, vector<8x10xf32>
    tpu.vector_store %arg10[%c32, %c0_21], %56 {strides = array<i32>} : memref<128x10xf32, #tpu.memory_space<vmem>>, vector<8x10xf32>,
    %58 = vector.extract_strided_slice %8 {offsets = [16, 0], sizes = [8, 80], strides = [1, 1]} : vector<72x80xf32> to vector<8x80xf32>
    %59 = arith.truncf %55 : vector<8x20xf32> to vector<8x20xbf16>
    %cst_22 = arith.constant dense<0.000000e+00> : vector<8x80xf32>
    %60 = tpu.matmul %59, %0, %cst_22 {dimension_numbers = #tpu.dot_dimension_numbers<[1], [0], [0], [1], [0, 0, 1, 1], [], []>} : vector<8x20xbf16>, vector<20x80xbf16>, vector<8x80xf32> -> vector<8x80xf32>
    %61 = arith.addf %58, %60 : vector<8x80xf32>
    %62 = arith.negf %61 : vector<8x80xf32>
    %63 = math.exp %62 : vector<8x80xf32>
    %cst_23 = arith.constant 1.000000e+00 : f32
    %64 = vector.broadcast %cst_23 : f32 to vector<8x80xf32>
    %65 = arith.addf %64, %63 : vector<8x80xf32>
    %66 = arith.divf %64, %65 : vector<8x80xf32>
    %67 = vector.extract_strided_slice %66 {offsets = [0, 0], sizes = [8, 20], strides = [1, 1]} : vector<8x80xf32> to vector<8x20xf32>
    %68 = vector.extract_strided_slice %66 {offsets = [0, 20], sizes = [8, 20], strides = [1, 1]} : vector<8x80xf32> to vector<8x20xf32>
    %69 = vector.extract_strided_slice %66 {offsets = [0, 40], sizes = [8, 20], strides = [1, 1]} : vector<8x80xf32> to vector<8x20xf32>
    %cst_24 = arith.constant 2.000000e+00 : f32
    %70 = vector.broadcast %cst_24 : f32 to vector<8x20xf32>
    %71 = arith.mulf %70, %69 : vector<8x20xf32>
    %cst_25 = arith.constant 1.000000e+00 : f32
    %72 = vector.broadcast %cst_25 : f32 to vector<8x20xf32>
    %73 = arith.subf %71, %72 : vector<8x20xf32>
    %74 = vector.extract_strided_slice %66 {offsets = [0, 60], sizes = [8, 20], strides = [1, 1]} : vector<8x80xf32> to vector<8x20xf32>
    %75 = arith.mulf %68, %53 : vector<8x20xf32>
    %76 = arith.mulf %67, %73 : vector<8x20xf32>
    %77 = arith.addf %75, %76 : vector<8x20xf32>
    %78 = math.tanh %77 : vector<8x20xf32>
    %79 = arith.mulf %74, %78 : vector<8x20xf32>
    %80 = vector.extract_strided_slice %79 {offsets = [0, 10], sizes = [8, 10], strides = [1, 1]} : vector<8x20xf32> to vector<8x10xf32>
    %c40 = arith.constant 40 : index
    %c0_26 = arith.constant 0 : index
    %81 = vector.load %arg10[%c40, %c0_26] : memref<128x10xf32, #tpu.memory_space<vmem>>, vector<8x10xf32>
    tpu.vector_store %arg10[%c40, %c0_26], %80 {strides = array<i32>} : memref<128x10xf32, #tpu.memory_space<vmem>>, vector<8x10xf32>,
    %82 = vector.extract_strided_slice %8 {offsets = [24, 0], sizes = [8, 80], strides = [1, 1]} : vector<72x80xf32> to vector<8x80xf32>
    %83 = arith.truncf %79 : vector<8x20xf32> to vector<8x20xbf16>
    %cst_27 = arith.constant dense<0.000000e+00> : vector<8x80xf32>
    %84 = tpu.matmul %83, %0, %cst_27 {dimension_numbers = #tpu.dot_dimension_numbers<[1], [0], [0], [1], [0, 0, 1, 1], [], []>} : vector<8x20xbf16>, vector<20x80xbf16>, vector<8x80xf32> -> vector<8x80xf32>
    %85 = arith.addf %82, %84 : vector<8x80xf32>
    %86 = arith.negf %85 : vector<8x80xf32>
    %87 = math.exp %86 : vector<8x80xf32>
    %cst_28 = arith.constant 1.000000e+00 : f32
    %88 = vector.broadcast %cst_28 : f32 to vector<8x80xf32>
    %89 = arith.addf %88, %87 : vector<8x80xf32>
    %90 = arith.divf %88, %89 : vector<8x80xf32>
    %91 = vector.extract_strided_slice %90 {offsets = [0, 0], sizes = [8, 20], strides = [1, 1]} : vector<8x80xf32> to vector<8x20xf32>
    %92 = vector.extract_strided_slice %90 {offsets = [0, 20], sizes = [8, 20], strides = [1, 1]} : vector<8x80xf32> to vector<8x20xf32>
    %93 = vector.extract_strided_slice %90 {offsets = [0, 40], sizes = [8, 20], strides = [1, 1]} : vector<8x80xf32> to vector<8x20xf32>
    %cst_29 = arith.constant 2.000000e+00 : f32
    %94 = vector.broadcast %cst_29 : f32 to vector<8x20xf32>
    %95 = arith.mulf %94, %93 : vector<8x20xf32>
    %cst_30 = arith.constant 1.000000e+00 : f32
    %96 = vector.broadcast %cst_30 : f32 to vector<8x20xf32>
    %97 = arith.subf %95, %96 : vector<8x20xf32>
    %98 = vector.extract_strided_slice %90 {offsets = [0, 60], sizes = [8, 20], strides = [1, 1]} : vector<8x80xf32> to vector<8x20xf32>
    %99 = arith.mulf %92, %77 : vector<8x20xf32>
    %100 = arith.mulf %91, %97 : vector<8x20xf32>
    %101 = arith.addf %99, %100 : vector<8x20xf32>
    %102 = math.tanh %101 : vector<8x20xf32>
    %103 = arith.mulf %98, %102 : vector<8x20xf32>
    %104 = vector.extract_strided_slice %103 {offsets = [0, 10], sizes = [8, 10], strides = [1, 1]} : vector<8x20xf32> to vector<8x10xf32>
    %c48 = arith.constant 48 : index
    %c0_31 = arith.constant 0 : index
    %105 = vector.load %arg10[%c48, %c0_31] : memref<128x10xf32, #tpu.memory_space<vmem>>, vector<8x10xf32>
    tpu.vector_store %arg10[%c48, %c0_31], %104 {strides = array<i32>} : memref<128x10xf32, #tpu.memory_space<vmem>>, vector<8x10xf32>,
    %106 = vector.extract_strided_slice %8 {offsets = [32, 0], sizes = [8, 80], strides = [1, 1]} : vector<72x80xf32> to vector<8x80xf32>
    %107 = arith.truncf %103 : vector<8x20xf32> to vector<8x20xbf16>
    %cst_32 = arith.constant dense<0.000000e+00> : vector<8x80xf32>
    %108 = tpu.matmul %107, %0, %cst_32 {dimension_numbers = #tpu.dot_dimension_numbers<[1], [0], [0], [1], [0, 0, 1, 1], [], []>} : vector<8x20xbf16>, vector<20x80xbf16>, vector<8x80xf32> -> vector<8x80xf32>
    %109 = arith.addf %106, %108 : vector<8x80xf32>
    %110 = arith.negf %109 : vector<8x80xf32>
    %111 = math.exp %110 : vector<8x80xf32>
    %cst_33 = arith.constant 1.000000e+00 : f32
    %112 = vector.broadcast %cst_33 : f32 to vector<8x80xf32>
    %113 = arith.addf %112, %111 : vector<8x80xf32>
    %114 = arith.divf %112, %113 : vector<8x80xf32>
    %115 = vector.extract_strided_slice %114 {offsets = [0, 0], sizes = [8, 20], strides = [1, 1]} : vector<8x80xf32> to vector<8x20xf32>
    %116 = vector.extract_strided_slice %114 {offsets = [0, 20], sizes = [8, 20], strides = [1, 1]} : vector<8x80xf32> to vector<8x20xf32>
    %117 = vector.extract_strided_slice %114 {offsets = [0, 40], sizes = [8, 20], strides = [1, 1]} : vector<8x80xf32> to vector<8x20xf32>
    %cst_34 = arith.constant 2.000000e+00 : f32
    %118 = vector.broadcast %cst_34 : f32 to vector<8x20xf32>
    %119 = arith.mulf %118, %117 : vector<8x20xf32>
    %cst_35 = arith.constant 1.000000e+00 : f32
    %120 = vector.broadcast %cst_35 : f32 to vector<8x20xf32>
    %121 = arith.subf %119, %120 : vector<8x20xf32>
    %122 = vector.extract_strided_slice %114 {offsets = [0, 60], sizes = [8, 20], strides = [1, 1]} : vector<8x80xf32> to vector<8x20xf32>
    %123 = arith.mulf %116, %101 : vector<8x20xf32>
    %124 = arith.mulf %115, %121 : vector<8x20xf32>
    %125 = arith.addf %123, %124 : vector<8x20xf32>
    %126 = math.tanh %125 : vector<8x20xf32>
    %127 = arith.mulf %122, %126 : vector<8x20xf32>
    %128 = vector.extract_strided_slice %127 {offsets = [0, 10], sizes = [8, 10], strides = [1, 1]} : vector<8x20xf32> to vector<8x10xf32>
    %c56 = arith.constant 56 : index
    %c0_36 = arith.constant 0 : index
    %129 = vector.load %arg10[%c56, %c0_36] : memref<128x10xf32, #tpu.memory_space<vmem>>, vector<8x10xf32>
    tpu.vector_store %arg10[%c56, %c0_36], %128 {strides = array<i32>} : memref<128x10xf32, #tpu.memory_space<vmem>>, vector<8x10xf32>,
    %130 = vector.extract_strided_slice %8 {offsets = [40, 0], sizes = [8, 80], strides = [1, 1]} : vector<72x80xf32> to vector<8x80xf32>
    %131 = arith.truncf %127 : vector<8x20xf32> to vector<8x20xbf16>
    %cst_37 = arith.constant dense<0.000000e+00> : vector<8x80xf32>
    %132 = tpu.matmul %131, %0, %cst_37 {dimension_numbers = #tpu.dot_dimension_numbers<[1], [0], [0], [1], [0, 0, 1, 1], [], []>} : vector<8x20xbf16>, vector<20x80xbf16>, vector<8x80xf32> -> vector<8x80xf32>
    %133 = arith.addf %130, %132 : vector<8x80xf32>
    %134 = arith.negf %133 : vector<8x80xf32>
    %135 = math.exp %134 : vector<8x80xf32>
    %cst_38 = arith.constant 1.000000e+00 : f32
    %136 = vector.broadcast %cst_38 : f32 to vector<8x80xf32>
    %137 = arith.addf %136, %135 : vector<8x80xf32>
    %138 = arith.divf %136, %137 : vector<8x80xf32>
    %139 = vector.extract_strided_slice %138 {offsets = [0, 0], sizes = [8, 20], strides = [1, 1]} : vector<8x80xf32> to vector<8x20xf32>
    %140 = vector.extract_strided_slice %138 {offsets = [0, 20], sizes = [8, 20], strides = [1, 1]} : vector<8x80xf32> to vector<8x20xf32>
    %141 = vector.extract_strided_slice %138 {offsets = [0, 40], sizes = [8, 20], strides = [1, 1]} : vector<8x80xf32> to vector<8x20xf32>
    %cst_39 = arith.constant 2.000000e+00 : f32
    %142 = vector.broadcast %cst_39 : f32 to vector<8x20xf32>
    %143 = arith.mulf %142, %141 : vector<8x20xf32>
    %cst_40 = arith.constant 1.000000e+00 : f32
    %144 = vector.broadcast %cst_40 : f32 to vector<8x20xf32>
    %145 = arith.subf %143, %144 : vector<8x20xf32>
    %146 = vector.extract_strided_slice %138 {offsets = [0, 60], sizes = [8, 20], strides = [1, 1]} : vector<8x80xf32> to vector<8x20xf32>
    %147 = arith.mulf %140, %125 : vector<8x20xf32>
    %148 = arith.mulf %139, %145 : vector<8x20xf32>
    %149 = arith.addf %147, %148 : vector<8x20xf32>
    %150 = math.tanh %149 : vector<8x20xf32>
    %151 = arith.mulf %146, %150 : vector<8x20xf32>
    %152 = vector.extract_strided_slice %151 {offsets = [0, 10], sizes = [8, 10], strides = [1, 1]} : vector<8x20xf32> to vector<8x10xf32>
    %c64 = arith.constant 64 : index
    %c0_41 = arith.constant 0 : index
    %153 = vector.load %arg10[%c64, %c0_41] : memref<128x10xf32, #tpu.memory_space<vmem>>, vector<8x10xf32>
    tpu.vector_store %arg10[%c64, %c0_41], %152 {strides = array<i32>} : memref<128x10xf32, #tpu.memory_space<vmem>>, vector<8x10xf32>,
    %154 = vector.extract_strided_slice %8 {offsets = [48, 0], sizes = [8, 80], strides = [1, 1]} : vector<72x80xf32> to vector<8x80xf32>
    %155 = arith.truncf %151 : vector<8x20xf32> to vector<8x20xbf16>
    %cst_42 = arith.constant dense<0.000000e+00> : vector<8x80xf32>
    %156 = tpu.matmul %155, %0, %cst_42 {dimension_numbers = #tpu.dot_dimension_numbers<[1], [0], [0], [1], [0, 0, 1, 1], [], []>} : vector<8x20xbf16>, vector<20x80xbf16>, vector<8x80xf32> -> vector<8x80xf32>
    %157 = arith.addf %154, %156 : vector<8x80xf32>
    %158 = arith.negf %157 : vector<8x80xf32>
    %159 = math.exp %158 : vector<8x80xf32>
    %cst_43 = arith.constant 1.000000e+00 : f32
    %160 = vector.broadcast %cst_43 : f32 to vector<8x80xf32>
    %161 = arith.addf %160, %159 : vector<8x80xf32>
    %162 = arith.divf %160, %161 : vector<8x80xf32>
    %163 = vector.extract_strided_slice %162 {offsets = [0, 0], sizes = [8, 20], strides = [1, 1]} : vector<8x80xf32> to vector<8x20xf32>
    %164 = vector.extract_strided_slice %162 {offsets = [0, 20], sizes = [8, 20], strides = [1, 1]} : vector<8x80xf32> to vector<8x20xf32>
    %165 = vector.extract_strided_slice %162 {offsets = [0, 40], sizes = [8, 20], strides = [1, 1]} : vector<8x80xf32> to vector<8x20xf32>
    %cst_44 = arith.constant 2.000000e+00 : f32
    %166 = vector.broadcast %cst_44 : f32 to vector<8x20xf32>
    %167 = arith.mulf %166, %165 : vector<8x20xf32>
    %cst_45 = arith.constant 1.000000e+00 : f32
    %168 = vector.broadcast %cst_45 : f32 to vector<8x20xf32>
    %169 = arith.subf %167, %168 : vector<8x20xf32>
    %170 = vector.extract_strided_slice %162 {offsets = [0, 60], sizes = [8, 20], strides = [1, 1]} : vector<8x80xf32> to vector<8x20xf32>
    %171 = arith.mulf %164, %149 : vector<8x20xf32>
    %172 = arith.mulf %163, %169 : vector<8x20xf32>
    %173 = arith.addf %171, %172 : vector<8x20xf32>
    %174 = math.tanh %173 : vector<8x20xf32>
    %175 = arith.mulf %170, %174 : vector<8x20xf32>
    %176 = vector.extract_strided_slice %175 {offsets = [0, 10], sizes = [8, 10], strides = [1, 1]} : vector<8x20xf32> to vector<8x10xf32>
    %c72 = arith.constant 72 : index
    %c0_46 = arith.constant 0 : index
    %177 = vector.load %arg10[%c72, %c0_46] : memref<128x10xf32, #tpu.memory_space<vmem>>, vector<8x10xf32>
    tpu.vector_store %arg10[%c72, %c0_46], %176 {strides = array<i32>} : memref<128x10xf32, #tpu.memory_space<vmem>>, vector<8x10xf32>,
    %178 = vector.extract_strided_slice %8 {offsets = [56, 0], sizes = [8, 80], strides = [1, 1]} : vector<72x80xf32> to vector<8x80xf32>
    %179 = arith.truncf %175 : vector<8x20xf32> to vector<8x20xbf16>
    %cst_47 = arith.constant dense<0.000000e+00> : vector<8x80xf32>
    %180 = tpu.matmul %179, %0, %cst_47 {dimension_numbers = #tpu.dot_dimension_numbers<[1], [0], [0], [1], [0, 0, 1, 1], [], []>} : vector<8x20xbf16>, vector<20x80xbf16>, vector<8x80xf32> -> vector<8x80xf32>
    %181 = arith.addf %178, %180 : vector<8x80xf32>
    %182 = arith.negf %181 : vector<8x80xf32>
    %183 = math.exp %182 : vector<8x80xf32>
    %cst_48 = arith.constant 1.000000e+00 : f32
    %184 = vector.broadcast %cst_48 : f32 to vector<8x80xf32>
    %185 = arith.addf %184, %183 : vector<8x80xf32>
    %186 = arith.divf %184, %185 : vector<8x80xf32>
    %187 = vector.extract_strided_slice %186 {offsets = [0, 0], sizes = [8, 20], strides = [1, 1]} : vector<8x80xf32> to vector<8x20xf32>
    %188 = vector.extract_strided_slice %186 {offsets = [0, 20], sizes = [8, 20], strides = [1, 1]} : vector<8x80xf32> to vector<8x20xf32>
    %189 = vector.extract_strided_slice %186 {offsets = [0, 40], sizes = [8, 20], strides = [1, 1]} : vector<8x80xf32> to vector<8x20xf32>
    %cst_49 = arith.constant 2.000000e+00 : f32
    %190 = vector.broadcast %cst_49 : f32 to vector<8x20xf32>
    %191 = arith.mulf %190, %189 : vector<8x20xf32>
    %cst_50 = arith.constant 1.000000e+00 : f32
    %192 = vector.broadcast %cst_50 : f32 to vector<8x20xf32>
    %193 = arith.subf %191, %192 : vector<8x20xf32>
    %194 = vector.extract_strided_slice %186 {offsets = [0, 60], sizes = [8, 20], strides = [1, 1]} : vector<8x80xf32> to vector<8x20xf32>
    %195 = arith.mulf %188, %173 : vector<8x20xf32>
    %196 = arith.mulf %187, %193 : vector<8x20xf32>
    %197 = arith.addf %195, %196 : vector<8x20xf32>
    %198 = math.tanh %197 : vector<8x20xf32>
    %199 = arith.mulf %194, %198 : vector<8x20xf32>
    %200 = vector.extract_strided_slice %199 {offsets = [0, 10], sizes = [8, 10], strides = [1, 1]} : vector<8x20xf32> to vector<8x10xf32>
    %c80 = arith.constant 80 : index
    %c0_51 = arith.constant 0 : index
    %201 = vector.load %arg10[%c80, %c0_51] : memref<128x10xf32, #tpu.memory_space<vmem>>, vector<8x10xf32>
    tpu.vector_store %arg10[%c80, %c0_51], %200 {strides = array<i32>} : memref<128x10xf32, #tpu.memory_space<vmem>>, vector<8x10xf32>,
    %202 = vector.extract_strided_slice %8 {offsets = [64, 0], sizes = [8, 80], strides = [1, 1]} : vector<72x80xf32> to vector<8x80xf32>
    %203 = arith.truncf %199 : vector<8x20xf32> to vector<8x20xbf16>
    %cst_52 = arith.constant dense<0.000000e+00> : vector<8x80xf32>
    %204 = tpu.matmul %203, %0, %cst_52 {dimension_numbers = #tpu.dot_dimension_numbers<[1], [0], [0], [1], [0, 0, 1, 1], [], []>} : vector<8x20xbf16>, vector<20x80xbf16>, vector<8x80xf32> -> vector<8x80xf32>
    %205 = arith.addf %202, %204 : vector<8x80xf32>
    %206 = arith.negf %205 : vector<8x80xf32>
    %207 = math.exp %206 : vector<8x80xf32>
    %cst_53 = arith.constant 1.000000e+00 : f32
    %208 = vector.broadcast %cst_53 : f32 to vector<8x80xf32>
    %209 = arith.addf %208, %207 : vector<8x80xf32>
    %210 = arith.divf %208, %209 : vector<8x80xf32>
    %211 = vector.extract_strided_slice %210 {offsets = [0, 0], sizes = [8, 20], strides = [1, 1]} : vector<8x80xf32> to vector<8x20xf32>
    %212 = vector.extract_strided_slice %210 {offsets = [0, 20], sizes = [8, 20], strides = [1, 1]} : vector<8x80xf32> to vector<8x20xf32>
    %213 = vector.extract_strided_slice %210 {offsets = [0, 40], sizes = [8, 20], strides = [1, 1]} : vector<8x80xf32> to vector<8x20xf32>
    %cst_54 = arith.constant 2.000000e+00 : f32
    %214 = vector.broadcast %cst_54 : f32 to vector<8x20xf32>
    %215 = arith.mulf %214, %213 : vector<8x20xf32>
    %cst_55 = arith.constant 1.000000e+00 : f32
    %216 = vector.broadcast %cst_55 : f32 to vector<8x20xf32>
    %217 = arith.subf %215, %216 : vector<8x20xf32>
    %218 = vector.extract_strided_slice %210 {offsets = [0, 60], sizes = [8, 20], strides = [1, 1]} : vector<8x80xf32> to vector<8x20xf32>
    %219 = arith.mulf %212, %197 : vector<8x20xf32>
    %220 = arith.mulf %211, %217 : vector<8x20xf32>
    %221 = arith.addf %219, %220 : vector<8x20xf32>
    %222 = math.tanh %221 : vector<8x20xf32>
    %223 = arith.mulf %218, %222 : vector<8x20xf32>
    %224 = vector.extract_strided_slice %223 {offsets = [0, 10], sizes = [8, 10], strides = [1, 1]} : vector<8x20xf32> to vector<8x10xf32>
    %c88 = arith.constant 88 : index
    %c0_56 = arith.constant 0 : index
    %225 = vector.load %arg10[%c88, %c0_56] : memref<128x10xf32, #tpu.memory_space<vmem>>, vector<8x10xf32>
    tpu.vector_store %arg10[%c88, %c0_56], %224 {strides = array<i32>} : memref<128x10xf32, #tpu.memory_space<vmem>>, vector<8x10xf32>,
    %c0_57 = arith.constant 0 : index
    %c0_58 = arith.constant 0 : index
    %226 = vector.load %arg10[%c0_57, %c0_58] : memref<128x10xf32, #tpu.memory_space<vmem>>, vector<64x10xf32>
    %c8 = arith.constant 8 : index
    %c0_59 = arith.constant 0 : index
    %227 = vector.load %arg10[%c8, %c0_59] : memref<128x10xf32, #tpu.memory_space<vmem>>, vector<64x10xf32>
    %c16 = arith.constant 16 : index
    %c0_60 = arith.constant 0 : index
    %228 = vector.load %arg10[%c16, %c0_60] : memref<128x10xf32, #tpu.memory_space<vmem>>, vector<64x10xf32>
    %c24 = arith.constant 24 : index
    %c0_61 = arith.constant 0 : index
    %229 = vector.load %arg10[%c24, %c0_61] : memref<128x10xf32, #tpu.memory_space<vmem>>, vector<64x10xf32>
    %c32_62 = arith.constant 32 : index
    %c0_63 = arith.constant 0 : index
    %230 = vector.load %arg10[%c32_62, %c0_63] : memref<128x10xf32, #tpu.memory_space<vmem>>, vector<64x10xf32>
    %c40_64 = arith.constant 40 : index
    %c0_65 = arith.constant 0 : index
    %231 = vector.load %arg10[%c40_64, %c0_65] : memref<128x10xf32, #tpu.memory_space<vmem>>, vector<64x10xf32>
    %c48_66 = arith.constant 48 : index
    %c0_67 = arith.constant 0 : index
    %232 = vector.load %arg10[%c48_66, %c0_67] : memref<128x10xf32, #tpu.memory_space<vmem>>, vector<64x10xf32>
    %c56_68 = arith.constant 56 : index
    %c0_69 = arith.constant 0 : index
    %233 = vector.load %arg10[%c56_68, %c0_69] : memref<128x10xf32, #tpu.memory_space<vmem>>, vector<64x10xf32>
    %c64_70 = arith.constant 64 : index
    %c0_71 = arith.constant 0 : index
    %234 = vector.load %arg10[%c64_70, %c0_71] : memref<128x10xf32, #tpu.memory_space<vmem>>, vector<64x10xf32>
    %235 = tpu.concatenate %226, %227, %228, %229, %230, %231, %232, %233, %234 in 1 : vector<64x10xf32>, vector<64x10xf32>, vector<64x10xf32>, vector<64x10xf32>, vector<64x10xf32>, vector<64x10xf32>, vector<64x10xf32>, vector<64x10xf32>, vector<64x10xf32> -> vector<64x90xf32>
    %c0_72 = arith.constant 0 : index
    %c0_73 = arith.constant 0 : index
    %236 = vector.load %arg5[%c0_72, %c0_73] : memref<90x10xf32, #tpu.memory_space<vmem>>, vector<90x10xf32>
    %cst_74 = arith.constant dense<0.000000e+00> : vector<64x10xf32>
    %237 = tpu.matmul %235, %236, %cst_74 {dimension_numbers = #tpu.dot_dimension_numbers<[1], [0], [0], [1], [0, 0, 1, 1], [], []>} : vector<64x90xf32>, vector<90x10xf32>, vector<64x10xf32> -> vector<64x10xf32>
    %c0_75 = arith.constant 0 : index
    %c0_76 = arith.constant 0 : index
    %238 = vector.load %arg6[%c0_75, %c0_76] : memref<1x10xf32, #tpu.memory_space<vmem>>, vector<1x10xf32>
    %239 = vector.broadcast %238 : vector<1x10xf32> to vector<64x10xf32>
    %240 = arith.addf %237, %239 : vector<64x10xf32>
    %cst_77 = arith.constant 0.000000e+00 : f32
    %241 = vector.broadcast %cst_77 : f32 to vector<64x10xf32>
    %242 = arith.maximumf %240, %241 : vector<64x10xf32>
    %c0_78 = arith.constant 0 : index
    %c0_79 = arith.constant 0 : index
    %243 = vector.load %arg7[%c0_78, %c0_79] : memref<10x4xf32, #tpu.memory_space<vmem>>, vector<10x4xf32>
    %cst_80 = arith.constant dense<0.000000e+00> : vector<64x4xf32>
    %244 = tpu.matmul %242, %243, %cst_80 {dimension_numbers = #tpu.dot_dimension_numbers<[1], [0], [0], [1], [0, 0, 1, 1], [], []>} : vector<64x10xf32>, vector<10x4xf32>, vector<64x4xf32> -> vector<64x4xf32>
    %c0_81 = arith.constant 0 : index
    %c0_82 = arith.constant 0 : index
    %245 = vector.load %arg8[%c0_81, %c0_82] : memref<1x4xf32, #tpu.memory_space<vmem>>, vector<1x4xf32>
    %246 = vector.broadcast %245 : vector<1x4xf32> to vector<64x4xf32>
    %247 = arith.addf %244, %246 : vector<64x4xf32>
    %c0_83 = arith.constant 0 : index
    %c0_84 = arith.constant 0 : index
    %248 = vector.load %arg9[%c0_83, %c0_84] : memref<64x4xf32, #tpu.memory_space<vmem>>, vector<64x4xf32>
    tpu.vector_store %arg9[%c0_83, %c0_84], %247 {strides = array<i32>} : memref<64x4xf32, #tpu.memory_space<vmem>>, vector<64x4xf32>,
    return
  }
}

</mosaic_0001>

<llo_original>
// kernel: tpu_custom_call.1
$region0: #{tpu_custom_call.1}
  #allocation0 [shape = 'u32[]', space=smem, size = 0x4, offset = 0x4, fixed_abs, tag = 'smem constant byte address 0x4 - core index']
  #allocation1 [shape = 'u32[72,128]{1,0:T(1,128)}', space=vmem, size = 0x9000, scoped, tag = 'internal scratch']
  #allocation2 [shape = 'f32[128,10]{1,0:T(8,128)}', space=vmem, size = 0x10000, scoped, tag = 'scratch operand']
  %s0 = inlined_call_operand.vmem [shape: f32[72,4], index: 0, kind: input, shape index: {}]
  %s1 = inlined_call_operand.vmem [shape: bf16[4,80], index: 1, kind: input, shape index: {}]
  %s2 = inlined_call_operand.vmem [shape: f32[1,80], index: 2, kind: input, shape index: {}]
  %s3 = inlined_call_operand.vmem [shape: f32[1,80], index: 3, kind: input, shape index: {}]
  %s4 = inlined_call_operand.vmem [shape: bf16[20,80], index: 4, kind: input, shape index: {}]
  %s5 = inlined_call_operand.vmem [shape: f32[90,10], index: 5, kind: input, shape index: {}]
  %s6 = inlined_call_operand.vmem [shape: f32[1,10], index: 6, kind: input, shape index: {}]
  %s7 = inlined_call_operand.vmem [shape: f32[10,4], index: 7, kind: input, shape index: {}]
  %s8 = inlined_call_operand.vmem [shape: f32[1,4], index: 8, kind: input, shape index: {}]
  %s9 = inlined_call_operand.vmem [shape: f32[64,4], index: 9, kind: output, shape index: {}]
  %s10 = sld [smem:[#allocation0]]
  $region46: #{tpu_custom_call.1} parent=0
    _
  %s12 = ssub.s32 1, %s10
  %s13 = scalar_select 0, %s12, %s10
  // Predicated region
  $region2: #{tpu_custom_call.1} parent=0 // pred_check
    _
  $region3: #{tpu_custom_call.1} parent=0 // pred_check_branch
    %15 = sbr.rel (0) target = $region5
  $region4: #{tpu_custom_call.1} parent=0 // pred_region
    _
  $region5: #{tpu_custom_call.1} parent=0 // pred_fallthru
    _
  // Predicated region
  $region6: #{tpu_custom_call.1} parent=0 // pred_check
    _
  $region7: #{tpu_custom_call.1} parent=0 // pred_check_branch
    %17 = sbr.rel (0) target = $region9
  $region8: #{tpu_custom_call.1} parent=0 // pred_region
    _
  $region9: #{tpu_custom_call.1} parent=0 // pred_fallthru
    _
  // Predicated region
  $region10: #{tpu_custom_call.1} parent=0 // pred_check
    _
  $region11: #{tpu_custom_call.1} parent=0 // pred_check_branch
    %19 = sbr.rel (0) target = $region13
  $region12: #{tpu_custom_call.1} parent=0 // pred_region
    _
  $region13: #{tpu_custom_call.1} parent=0 // pred_fallthru
    _
  // Predicated region
  $region14: #{tpu_custom_call.1} parent=0 // pred_check
    _
  $region15: #{tpu_custom_call.1} parent=0 // pred_check_branch
    %21 = sbr.rel (0) target = $region17
  $region16: #{tpu_custom_call.1} parent=0 // pred_region
    _
  $region17: #{tpu_custom_call.1} parent=0 // pred_fallthru
    _
  // Predicated region
  $region18: #{tpu_custom_call.1} parent=0 // pred_check
    _
  $region19: #{tpu_custom_call.1} parent=0 // pred_check_branch
    %23 = sbr.rel (0) target = $region21
  $region20: #{tpu_custom_call.1} parent=0 // pred_region
    _
  $region21: #{tpu_custom_call.1} parent=0 // pred_fallthru
    _
  // Predicated region
  $region22: #{tpu_custom_call.1} parent=0 // pred_check
    _
  $region23: #{tpu_custom_call.1} parent=0 // pred_check_branch
    %25 = sbr.rel (0) target = $region25
  $region24: #{tpu_custom_call.1} parent=0 // pred_region
    _
  $region25: #{tpu_custom_call.1} parent=0 // pred_fallthru
    _
  // Predicated region
  $region26: #{tpu_custom_call.1} parent=0 // pred_check
    _
  $region27: #{tpu_custom_call.1} parent=0 // pred_check_branch
    %27 = sbr.rel (0) target = $region29
  $region28: #{tpu_custom_call.1} parent=0 // pred_region
    _
  $region29: #{tpu_custom_call.1} parent=0 // pred_fallthru
    _
  // Predicated region
  $region30: #{tpu_custom_call.1} parent=0 // pred_check
    _
  $region31: #{tpu_custom_call.1} parent=0 // pred_check_branch
    %29 = sbr.rel (0) target = $region33
  $region32: #{tpu_custom_call.1} parent=0 // pred_region
    _
  $region33: #{tpu_custom_call.1} parent=0 // pred_fallthru
    _
  // Predicated region
  $region34: #{tpu_custom_call.1} parent=0 // pred_check
    _
  $region35: #{tpu_custom_call.1} parent=0 // pred_check_branch
    %31 = sbr.rel (0) target = $region37
  $region36: #{tpu_custom_call.1} parent=0 // pred_region
    _
  $region37: #{tpu_custom_call.1} parent=0 // pred_fallthru
    _
  %v33 = vld [vmem:[%s4] sm:$0xf]
  %v34 = vld [vmem:[%s4 + $0x4] sm:$0xf]
  %v35 = vld [vmem:[%s4 + $0x8] sm:$0x3]
  %v36 = vld [vmem:[%s3] sm:$0x1]
  %v37 = vld [vmem:[%s0] sm:$0xff]
  %v38 = vld [vmem:[%s0 + $0x8] sm:$0xff]
  %v39 = vld [vmem:[%s0 + $0x10] sm:$0xff]
  %v40 = vld [vmem:[%s0 + $0x18] sm:$0xff]
  %v41 = vld [vmem:[%s0 + $0x20] sm:$0xff]
  %v42 = vld [vmem:[%s0 + $0x28] sm:$0xff]
  %v43 = vld [vmem:[%s0 + $0x30] sm:$0xff]
  %v44 = vld [vmem:[%s0 + $0x38] sm:$0xff]
  %v45 = vld [vmem:[%s0 + $0x40] sm:$0xff]
  %v46 = vpack.c.bf16 %v38, %v37
  %v47 = vpack.c.bf16 %v40, %v39
  %v48 = vpack.c.bf16 %v42, %v41
  %v49 = vpack.c.bf16 %v44, %v43
  %v50 = vpack.c.bf16 %v45, %v45
  %v51 = vld [vmem:[%s1] sm:$0x3]
  %v52 = vld [vmem:[%s2] sm:$0x1]
  %v54 = vperm.slane %v52, 0
  %vm56 = vcmask 31744
  %v58 = vsel %vm56, %v46, 0
  %v61 = vsel %vm56, %v47, 0
  %v64 = vsel %vm56, %v48, 0
  %v67 = vsel %vm56, %v49, 0
  %v70 = vsel %vm56, %v50, 0
  %vm72 = vcmask 1041408
  %v74 = vsel %vm72, %v51, 0
  %76 = vmatpush.bf16.msra.mxu0 0
  %77 = vmatpush.bf16.msra.mxu0 0
  %78 = vmatpush.bf16.msra.mxu0 0
  %79 = vmatpush.bf16.msra.mxu0 0
  %80 = vmatpush.bf16.msra.mxu0 0
  %81 = vmatpush.bf16.msra.mxu0 0
  %82 = vmatpush.bf16.msra.mxu0 0
  %83 = vmatpush.bf16.msra.mxu0 %v74
  %84 = vmatmul.bf16.gmra.mxu0 %v58
  %v85 = vpop.f32.mrf.mxu0
  %v86 = vadd.f32 %v54, %v85
  %v87 = vpop.f32.mrf.mxu0
  %v88 = vadd.f32 %v54, %v87
  %89 = vmatmul.bf16.gmra.mxu0 %v61
  %v90 = vpop.f32.mrf.mxu0
  %v91 = vadd.f32 %v54, %v90
  %v92 = vpop.f32.mrf.mxu0
  %v93 = vadd.f32 %v54, %v92
  %94 = vmatmul.bf16.gmra.mxu0 %v64
  %v95 = vpop.f32.mrf.mxu0
  %v96 = vadd.f32 %v54, %v95
  %v97 = vpop.f32.mrf.mxu0
  %v98 = vadd.f32 %v54, %v97
  %99 = vmatmul.bf16.gmra.mxu0 %v67
  %v100 = vpop.f32.mrf.mxu0
  %v101 = vadd.f32 %v54, %v100
  %v102 = vpop.f32.mrf.mxu0
  %v103 = vadd.f32 %v54, %v102
  %104 = vmatmul.bf16.gmra.mxu0 %v70
  %v105 = vpop.f32.mrf.mxu0
  %v106 = vadd.f32 %v54, %v105
  %v107 = vpop.f32.mrf.mxu0
  %108 = vdwg.mxu0
  %vm109 = vcmask 80896
  %110 = vst.msk [vmem:[#allocation2] sm:$0xff] %vm109, 0.0
  %111 = vst.msk [vmem:[#allocation2 + $0x8] sm:$0xff] %vm109, 0.0
  %112 = vst.msk [vmem:[#allocation2 + $0x10] sm:$0xff] %vm109, 0.0
  %113 = vst.msk [vmem:[#allocation2 + $0x18] sm:$0xff] %vm109, 0.0
  %114 = vst.msk [vmem:[#allocation2 + $0x60] sm:$0xff] %vm109, 0.0
  %115 = vst.msk [vmem:[#allocation2 + $0x68] sm:$0xff] %vm109, 0.0
  %116 = vst.msk [vmem:[#allocation2 + $0x70] sm:$0xff] %vm109, 0.0
  %117 = vst.msk [vmem:[#allocation2 + $0x78] sm:$0xff] %vm109, 0.0
  %v119 = vperm.slane %v36, 0
  %v121 = vmul.f32 %v86, %v119
  %v122 = vxor.u32 %v121, 2147483648
  %v123 = vmul.f32 %v122, 1.442695
  %v124 = vpow.pop %v123
  %v125 = vadd.f32 %v124, 1.0
  %v126 = vrcp.pop %v125
  %v127 = vmul.f32 %v125, %v126
  %v128 = vsub.f32 1.0, %v127
  %v129 = vmul.f32 %v126, %v128
  %v130 = vadd.f32 %v126, %v129
  %vm131 = vweird.f32 %v125
  %vm132 = vweird.f32 %v126
  %vm133 = vmor %vm131, %vm132
  %v134 = vsel %vm133, %v126, %v130
  %v135 = vand.u32 2147483647, %v125
  %vm136 = vcmp.eq.f32.partialorder %v135, 8.507059e+37
  %v137 = vand.u32 %v125, 2147483648
  %v138 = vor.u32 1.1754944e-38, %v137
  %v139 = vsel %vm136, %v138, %v134
  %v140 = vmul.f32 1.0, %v139
  %v141 = vmul.f32 %v140, 2.0
  %v142 = vsub.f32 %v141, 1.0
  %v143 = vmul.f32 %v140, 0.0
  %145 = vrot.lane.b32.xlu0 %v142, 88
  %v146 = vpop.permute.xlu0 %145
  %v148 = vmul.f32 %v140, %v146
  %150 = vrot.lane.b32.xlu0 %v148, 20
  %v151 = vpop.permute.xlu0 %150
  %v153 = vadd.f32 %v143, %v151
  %v154 = vtanh.pop %v153
  %156 = vrot.lane.b32.xlu0 %v154, 40
  %v157 = vpop.permute.xlu0 %156
  %v159 = vmul.f32 %v140, %v157
  %v160 = vpack.c.bf16 %v159, %v159
  %162 = vrot.lane.b32.xlu0 %v160, 68
  %v163 = vpop.permute.xlu0 %162
  %v167 = vunpack.c.l.b16 %v33
  %v168 = vunpack.c.l.b16 %v34
  %v169 = vunpack.c.l.b16 %v35
  %v170 = vpack.c.b16 %v168, %v167
  %v171 = vpack.c.b16 %v169, %v169
  %vm173 = vcmask 162816
  %v175 = vsel %vm173, %v163, 0
  %v178 = vsel %vm72, %v171, 0
  %180 = vmatpush.bf16.msra.mxu0 0
  %181 = vmatpush.bf16.msra.mxu0 0
  %182 = vmatpush.bf16.msra.mxu0 0
  %183 = vmatpush.bf16.msra.mxu0 0
  %184 = vmatpush.bf16.msra.mxu0 0
  %185 = vmatpush.bf16.msra.mxu0 0
  %186 = vmatpush.bf16.msra.mxu0 %v178
  %187 = vmatpush.bf16.msra.mxu0 %v170
  %188 = vmatmul.bf16.gmra.mxu0 %v175
  %v189 = vpop.f32.mrf.mxu0
  %v190 = vadd.f32 0.0, %v189
  %v191 = vpop.f32.mrf.mxu0
  %192 = vdwg.mxu0
  %v193 = vadd.f32 %v88, %v190
  %v194 = vxor.u32 %v193, 2147483648
  %v195 = vmul.f32 %v194, 1.442695
  %v196 = vpow.pop %v195
  %v197 = vadd.f32 %v196, 1.0
  %v198 = vrcp.pop %v197
  %v199 = vmul.f32 %v197, %v198
  %v200 = vsub.f32 1.0, %v199
  %v201 = vmul.f32 %v198, %v200
  %v202 = vadd.f32 %v198, %v201
  %vm203 = vweird.f32 %v197
  %vm204 = vweird.f32 %v198
  %vm205 = vmor %vm203, %vm204
  %v206 = vsel %vm205, %v198, %v202
  %v207 = vand.u32 2147483647, %v197
  %vm208 = vcmp.eq.f32.partialorder %v207, 8.507059e+37
  %v209 = vand.u32 %v197, 2147483648
  %v210 = vor.u32 1.1754944e-38, %v209
  %v211 = vsel %vm208, %v210, %v206
  %v212 = vmul.f32 1.0, %v211
  %v213 = vmul.f32 %v212, 2.0
  %v214 = vsub.f32 %v213, 1.0
  %v215 = vmul.f32 %v212, %v153
  %217 = vrot.lane.b32.xlu0 %v214, 88
  %v218 = vpop.permute.xlu0 %217
  %v220 = vmul.f32 %v212, %v218
  %222 = vrot.lane.b32.xlu0 %v220, 20
  %v223 = vpop.permute.xlu0 %222
  %v225 = vadd.f32 %v215, %v223
  %v226 = vtanh.pop %v225
  %228 = vrot.lane.b32.xlu0 %v226, 40
  %v229 = vpop.permute.xlu0 %228
  %v231 = vmul.f32 %v212, %v229
  %233 = vrot.lane.b32.xlu0 %v231, 58
  %v234 = vpop.permute.xlu0 %233
  %236 = vst.msk [vmem:[#allocation2 + $0x20] sm:$0xff] %vm109, %v234
  %v237 = vpack.c.bf16 %v231, %v231
  %239 = vrot.lane.b32.xlu0 %v237, 68
  %v240 = vpop.permute.xlu0 %239
  %v242 = vsel %vm173, %v240, 0
  %244 = vmatpush.bf16.msra.mxu0 0
  %245 = vmatpush.bf16.msra.mxu0 0
  %246 = vmatpush.bf16.msra.mxu0 0
  %247 = vmatpush.bf16.msra.mxu0 0
  %248 = vmatpush.bf16.msra.mxu0 0
  %249 = vmatpush.bf16.msra.mxu0 0
  %250 = vmatpush.bf16.msra.mxu0 %v178
  %251 = vmatpush.bf16.msra.mxu0 %v170
  %252 = vmatmul.bf16.gmra.mxu0 %v242
  %v253 = vpop.f32.mrf.mxu0
  %v254 = vadd.f32 0.0, %v253
  %v255 = vpop.f32.mrf.mxu0
  %256 = vdwg.mxu0
  %v257 = vadd.f32 %v91, %v254
  %v258 = vxor.u32 %v257, 2147483648
  %v259 = vmul.f32 %v258, 1.442695
  %v260 = vpow.pop %v259
  %v261 = vadd.f32 %v260, 1.0
  %v262 = vrcp.pop %v261
  %v263 = vmul.f32 %v261, %v262
  %v264 = vsub.f32 1.0, %v263
  %v265 = vmul.f32 %v262, %v264
  %v266 = vadd.f32 %v262, %v265
  %vm267 = vweird.f32 %v261
  %vm268 = vweird.f32 %v262
  %vm269 = vmor %vm267, %vm268
  %v270 = vsel %vm269, %v262, %v266
  %v271 = vand.u32 2147483647, %v261
  %vm272 = vcmp.eq.f32.partialorder %v271, 8.507059e+37
  %v273 = vand.u32 %v261, 2147483648
  %v274 = vor.u32 1.1754944e-38, %v273
  %v275 = vsel %vm272, %v274, %v270
  %v276 = vmul.f32 1.0, %v275
  %v277 = vmul.f32 %v276, 2.0
  %v278 = vsub.f32 %v277, 1.0
  %v279 = vmul.f32 %v276, %v225
  %281 = vrot.lane.b32.xlu0 %v278, 88
  %v282 = vpop.permute.xlu0 %281
  %v284 = vmul.f32 %v276, %v282
  %286 = vrot.lane.b32.xlu0 %v284, 20
  %v287 = vpop.permute.xlu0 %286
  %v289 = vadd.f32 %v279, %v287
  %v290 = vtanh.pop %v289
  %292 = vrot.lane.b32.xlu0 %v290, 40
  %v293 = vpop.permute.xlu0 %292
  %v295 = vmul.f32 %v276, %v293
  %297 = vrot.lane.b32.xlu0 %v295, 58
  %v298 = vpop.permute.xlu0 %297
  %300 = vst.msk [vmem:[#allocation2 + $0x28] sm:$0xff] %vm109, %v298
  %v301 = vpack.c.bf16 %v295, %v295
  %303 = vrot.lane.b32.xlu0 %v301, 68
  %v304 = vpop.permute.xlu0 %303
  %v306 = vsel %vm173, %v304, 0
  %308 = vmatpush.bf16.msra.mxu0 0
  %309 = vmatpush.bf16.msra.mxu0 0
  %310 = vmatpush.bf16.msra.mxu0 0
  %311 = vmatpush.bf16.msra.mxu0 0
  %312 = vmatpush.bf16.msra.mxu0 0
  %313 = vmatpush.bf16.msra.mxu0 0
  %314 = vmatpush.bf16.msra.mxu0 %v178
  %315 = vmatpush.bf16.msra.mxu0 %v170
  %316 = vmatmul.bf16.gmra.mxu0 %v306
  %v317 = vpop.f32.mrf.mxu0
  %v318 = vadd.f32 0.0, %v317
  %v319 = vpop.f32.mrf.mxu0
  %320 = vdwg.mxu0
  %v321 = vadd.f32 %v93, %v318
  %v322 = vxor.u32 %v321, 2147483648
  %v323 = vmul.f32 %v322, 1.442695
  %v324 = vpow.pop %v323
  %v325 = vadd.f32 %v324, 1.0
  %v326 = vrcp.pop %v325
  %v327 = vmul.f32 %v325, %v326
  %v328 = vsub.f32 1.0, %v327
  %v329 = vmul.f32 %v326, %v328
  %v330 = vadd.f32 %v326, %v329
  %vm331 = vweird.f32 %v325
  %vm332 = vweird.f32 %v326
  %vm333 = vmor %vm331, %vm332
  %v334 = vsel %vm333, %v326, %v330
  %v335 = vand.u32 2147483647, %v325
  %vm336 = vcmp.eq.f32.partialorder %v335, 8.507059e+37
  %v337 = vand.u32 %v325, 2147483648
  %v338 = vor.u32 1.1754944e-38, %v337
  %v339 = vsel %vm336, %v338, %v334
  %v340 = vmul.f32 1.0, %v339
  %v341 = vmul.f32 %v340, 2.0
  %v342 = vsub.f32 %v341, 1.0
  %v343 = vmul.f32 %v340, %v289
  %345 = vrot.lane.b32.xlu0 %v342, 88
  %v346 = vpop.permute.xlu0 %345
  %v348 = vmul.f32 %v340, %v346
  %350 = vrot.lane.b32.xlu0 %v348, 20
  %v351 = vpop.permute.xlu0 %350
  %v353 = vadd.f32 %v343, %v351
  %v354 = vtanh.pop %v353
  %356 = vrot.lane.b32.xlu0 %v354, 40
  %v357 = vpop.permute.xlu0 %356
  %v359 = vmul.f32 %v340, %v357
  %361 = vrot.lane.b32.xlu0 %v359, 58
  %v362 = vpop.permute.xlu0 %361
  %364 = vst.msk [vmem:[#allocation2 + $0x30] sm:$0xff] %vm109, %v362
  %v365 = vpack.c.bf16 %v359, %v359
  %367 = vrot.lane.b32.xlu0 %v365, 68
  %v368 = vpop.permute.xlu0 %367
  %v370 = vsel %vm173, %v368, 0
  %372 = vmatpush.bf16.msra.mxu0 0
  %373 = vmatpush.bf16.msra.mxu0 0
  %374 = vmatpush.bf16.msra.mxu0 0
  %375 = vmatpush.bf16.msra.mxu0 0
  %376 = vmatpush.bf16.msra.mxu0 0
  %377 = vmatpush.bf16.msra.mxu0 0
  %378 = vmatpush.bf16.msra.mxu0 %v178
  %379 = vmatpush.bf16.msra.mxu0 %v170
  %380 = vmatmul.bf16.gmra.mxu0 %v370
  %v381 = vpop.f32.mrf.mxu0
  %v382 = vadd.f32 0.0, %v381
  %v383 = vpop.f32.mrf.mxu0
  %384 = vdwg.mxu0
  %v385 = vadd.f32 %v96, %v382
  %v386 = vxor.u32 %v385, 2147483648
  %v387 = vmul.f32 %v386, 1.442695
  %v388 = vpow.pop %v387
  %v389 = vadd.f32 %v388, 1.0
  %v390 = vrcp.pop %v389
  %v391 = vmul.f32 %v389, %v390
  %v392 = vsub.f32 1.0, %v391
  %v393 = vmul.f32 %v390, %v392
  %v394 = vadd.f32 %v390, %v393
  %vm395 = vweird.f32 %v389
  %vm396 = vweird.f32 %v390
  %vm397 = vmor %vm395, %vm396
  %v398 = vsel %vm397, %v390, %v394
  %v399 = vand.u32 2147483647, %v389
  %vm400 = vcmp.eq.f32.partialorder %v399, 8.507059e+37
  %v401 = vand.u32 %v389, 2147483648
  %v402 = vor.u32 1.1754944e-38, %v401
  %v403 = vsel %vm400, %v402, %v398
  %v404 = vmul.f32 1.0, %v403
  %v405 = vmul.f32 %v404, 2.0
  %v406 = vsub.f32 %v405, 1.0
  %v407 = vmul.f32 %v404, %v353
  %409 = vrot.lane.b32.xlu0 %v406, 88
  %v410 = vpop.permute.xlu0 %409
  %v412 = vmul.f32 %v404, %v410
  %414 = vrot.lane.b32.xlu0 %v412, 20
  %v415 = vpop.permute.xlu0 %414
  %v417 = vadd.f32 %v407, %v415
  %v418 = vtanh.pop %v417
  %420 = vrot.lane.b32.xlu0 %v418, 40
  %v421 = vpop.permute.xlu0 %420
  %v423 = vmul.f32 %v404, %v421
  %425 = vrot.lane.b32.xlu0 %v423, 58
  %v426 = vpop.permute.xlu0 %425
  %428 = vst.msk [vmem:[#allocation2 + $0x38] sm:$0xff] %vm109, %v426
  %v429 = vpack.c.bf16 %v423, %v423
  %431 = vrot.lane.b32.xlu0 %v429, 68
  %v432 = vpop.permute.xlu0 %431
  %v434 = vsel %vm173, %v432, 0
  %436 = vmatpush.bf16.msra.mxu0 0
  %437 = vmatpush.bf16.msra.mxu0 0
  %438 = vmatpush.bf16.msra.mxu0 0
  %439 = vmatpush.bf16.msra.mxu0 0
  %440 = vmatpush.bf16.msra.mxu0 0
  %441 = vmatpush.bf16.msra.mxu0 0
  %442 = vmatpush.bf16.msra.mxu0 %v178
  %443 = vmatpush.bf16.msra.mxu0 %v170
  %444 = vmatmul.bf16.gmra.mxu0 %v434
  %v445 = vpop.f32.mrf.mxu0
  %v446 = vadd.f32 0.0, %v445
  %v447 = vpop.f32.mrf.mxu0
  %448 = vdwg.mxu0
  %v449 = vadd.f32 %v98, %v446
  %v450 = vxor.u32 %v449, 2147483648
  %v451 = vmul.f32 %v450, 1.442695
  %v452 = vpow.pop %v451
  %v453 = vadd.f32 %v452, 1.0
  %v454 = vrcp.pop %v453
  %v455 = vmul.f32 %v453, %v454
  %v456 = vsub.f32 1.0, %v455
  %v457 = vmul.f32 %v454, %v456
  %v458 = vadd.f32 %v454, %v457
  %vm459 = vweird.f32 %v453
  %vm460 = vweird.f32 %v454
  %vm461 = vmor %vm459, %vm460
  %v462 = vsel %vm461, %v454, %v458
  %v463 = vand.u32 2147483647, %v453
  %vm464 = vcmp.eq.f32.partialorder %v463, 8.507059e+37
  %v465 = vand.u32 %v453, 2147483648
  %v466 = vor.u32 1.1754944e-38, %v465
  %v467 = vsel %vm464, %v466, %v462
  %v468 = vmul.f32 1.0, %v467
  %v469 = vmul.f32 %v468, 2.0
  %v470 = vsub.f32 %v469, 1.0
  %v471 = vmul.f32 %v468, %v417
  %473 = vrot.lane.b32.xlu0 %v470, 88
  %v474 = vpop.permute.xlu0 %473
  %v476 = vmul.f32 %v468, %v474
  %478 = vrot.lane.b32.xlu0 %v476, 20
  %v479 = vpop.permute.xlu0 %478
  %v481 = vadd.f32 %v471, %v479
  %v482 = vtanh.pop %v481
  %484 = vrot.lane.b32.xlu0 %v482, 40
  %v485 = vpop.permute.xlu0 %484
  %v487 = vmul.f32 %v468, %v485
  %489 = vrot.lane.b32.xlu0 %v487, 58
  %v490 = vpop.permute.xlu0 %489
  %492 = vst.msk [vmem:[#allocation2 + $0x40] sm:$0xff] %vm109, %v490
  %v493 = vpack.c.bf16 %v487, %v487
  %495 = vrot.lane.b32.xlu0 %v493, 68
  %v496 = vpop.permute.xlu0 %495
  %v498 = vsel %vm173, %v496, 0
  %500 = vmatpush.bf16.msra.mxu0 0
  %501 = vmatpush.bf16.msra.mxu0 0
  %502 = vmatpush.bf16.msra.mxu0 0
  %503 = vmatpush.bf16.msra.mxu0 0
  %504 = vmatpush.bf16.msra.mxu0 0
  %505 = vmatpush.bf16.msra.mxu0 0
  %506 = vmatpush.bf16.msra.mxu0 %v178
  %507 = vmatpush.bf16.msra.mxu0 %v170
  %508 = vmatmul.bf16.gmra.mxu0 %v498
  %v509 = vpop.f32.mrf.mxu0
  %v510 = vadd.f32 0.0, %v509
  %v511 = vpop.f32.mrf.mxu0
  %512 = vdwg.mxu0
  %v513 = vadd.f32 %v101, %v510
  %v514 = vxor.u32 %v513, 2147483648
  %v515 = vmul.f32 %v514, 1.442695
  %v516 = vpow.pop %v515
  %v517 = vadd.f32 %v516, 1.0
  %v518 = vrcp.pop %v517
  %v519 = vmul.f32 %v517, %v518
  %v520 = vsub.f32 1.0, %v519
  %v521 = vmul.f32 %v518, %v520
  %v522 = vadd.f32 %v518, %v521
  %vm523 = vweird.f32 %v517
  %vm524 = vweird.f32 %v518
  %vm525 = vmor %vm523, %vm524
  %v526 = vsel %vm525, %v518, %v522
  %v527 = vand.u32 2147483647, %v517
  %vm528 = vcmp.eq.f32.partialorder %v527, 8.507059e+37
  %v529 = vand.u32 %v517, 2147483648
  %v530 = vor.u32 1.1754944e-38, %v529
  %v531 = vsel %vm528, %v530, %v526
  %v532 = vmul.f32 1.0, %v531
  %v533 = vmul.f32 %v532, 2.0
  %v534 = vsub.f32 %v533, 1.0
  %v535 = vmul.f32 %v532, %v481
  %537 = vrot.lane.b32.xlu0 %v534, 88
  %v538 = vpop.permute.xlu0 %537
  %v540 = vmul.f32 %v532, %v538
  %542 = vrot.lane.b32.xlu0 %v540, 20
  %v543 = vpop.permute.xlu0 %542
  %v545 = vadd.f32 %v535, %v543
  %v546 = vtanh.pop %v545
  %548 = vrot.lane.b32.xlu0 %v546, 40
  %v549 = vpop.permute.xlu0 %548
  %v551 = vmul.f32 %v532, %v549
  %553 = vrot.lane.b32.xlu0 %v551, 58
  %v554 = vpop.permute.xlu0 %553
  %556 = vst.msk [vmem:[#allocation2 + $0x48] sm:$0xff] %vm109, %v554
  %v557 = vpack.c.bf16 %v551, %v551
  %559 = vrot.lane.b32.xlu0 %v557, 68
  %v560 = vpop.permute.xlu0 %559
  %v562 = vsel %vm173, %v560, 0
  %564 = vmatpush.bf16.msra.mxu0 0
  %565 = vmatpush.bf16.msra.mxu0 0
  %566 = vmatpush.bf16.msra.mxu0 0
  %567 = vmatpush.bf16.msra.mxu0 0
  %568 = vmatpush.bf16.msra.mxu0 0
  %569 = vmatpush.bf16.msra.mxu0 0
  %570 = vmatpush.bf16.msra.mxu0 %v178
  %571 = vmatpush.bf16.msra.mxu0 %v170
  %572 = vmatmul.bf16.gmra.mxu0 %v562
  %v573 = vpop.f32.mrf.mxu0
  %v574 = vadd.f32 0.0, %v573
  %v575 = vpop.f32.mrf.mxu0
  %576 = vdwg.mxu0
  %v577 = vadd.f32 %v103, %v574
  %v578 = vxor.u32 %v577, 2147483648
  %v579 = vmul.f32 %v578, 1.442695
  %v580 = vpow.pop %v579
  %v581 = vadd.f32 %v580, 1.0
  %v582 = vrcp.pop %v581
  %v583 = vmul.f32 %v581, %v582
  %v584 = vsub.f32 1.0, %v583
  %v585 = vmul.f32 %v582, %v584
  %v586 = vadd.f32 %v582, %v585
  %vm587 = vweird.f32 %v581
  %vm588 = vweird.f32 %v582
  %vm589 = vmor %vm587, %vm588
  %v590 = vsel %vm589, %v582, %v586
  %v591 = vand.u32 2147483647, %v581
  %vm592 = vcmp.eq.f32.partialorder %v591, 8.507059e+37
  %v593 = vand.u32 %v581, 2147483648
  %v594 = vor.u32 1.1754944e-38, %v593
  %v595 = vsel %vm592, %v594, %v590
  %v596 = vmul.f32 1.0, %v595
  %v597 = vmul.f32 %v596, 2.0
  %v598 = vsub.f32 %v597, 1.0
  %v599 = vmul.f32 %v596, %v545
  %601 = vrot.lane.b32.xlu0 %v598, 88
  %v602 = vpop.permute.xlu0 %601
  %v604 = vmul.f32 %v596, %v602
  %606 = vrot.lane.b32.xlu0 %v604, 20
  %v607 = vpop.permute.xlu0 %606
  %v609 = vadd.f32 %v599, %v607
  %v610 = vtanh.pop %v609
  %612 = vrot.lane.b32.xlu0 %v610, 40
  %v613 = vpop.permute.xlu0 %612
  %v615 = vmul.f32 %v596, %v613
  %617 = vrot.lane.b32.xlu0 %v615, 58
  %v618 = vpop.permute.xlu0 %617
  %620 = vst.msk [vmem:[#allocation2 + $0x50] sm:$0xff] %vm109, %v618
  %v621 = vpack.c.bf16 %v615, %v615
  %623 = vrot.lane.b32.xlu0 %v621, 68
  %v624 = vpop.permute.xlu0 %623
  %v626 = vsel %vm173, %v624, 0
  %628 = vmatpush.bf16.msra.mxu0 0
  %629 = vmatpush.bf16.msra.mxu0 0
  %630 = vmatpush.bf16.msra.mxu0 0
  %631 = vmatpush.bf16.msra.mxu0 0
  %632 = vmatpush.bf16.msra.mxu0 0
  %633 = vmatpush.bf16.msra.mxu0 0
  %634 = vmatpush.bf16.msra.mxu0 %v178
  %635 = vmatpush.bf16.msra.mxu0 %v170
  %636 = vmatmul.bf16.gmra.mxu0 %v626
  %v637 = vpop.f32.mrf.mxu0
  %v638 = vadd.f32 0.0, %v637
  %v639 = vpop.f32.mrf.mxu0
  %640 = vdwg.mxu0
  %v641 = vadd.f32 %v106, %v638
  %v642 = vxor.u32 %v641, 2147483648
  %v643 = vmul.f32 %v642, 1.442695
  %v644 = vpow.pop %v643
  %v645 = vadd.f32 %v644, 1.0
  %v646 = vrcp.pop %v645
  %v647 = vmul.f32 %v645, %v646
  %v648 = vsub.f32 1.0, %v647
  %v649 = vmul.f32 %v646, %v648
  %v650 = vadd.f32 %v646, %v649
  %vm651 = vweird.f32 %v645
  %vm652 = vweird.f32 %v646
  %vm653 = vmor %vm651, %vm652
  %v654 = vsel %vm653, %v646, %v650
  %v655 = vand.u32 2147483647, %v645
  %vm656 = vcmp.eq.f32.partialorder %v655, 8.507059e+37
  %v657 = vand.u32 %v645, 2147483648
  %v658 = vor.u32 1.1754944e-38, %v657
  %v659 = vsel %vm656, %v658, %v654
  %v660 = vmul.f32 1.0, %v659
  %v661 = vmul.f32 %v660, 2.0
  %v662 = vsub.f32 %v661, 1.0
  %v663 = vmul.f32 %v660, %v609
  %665 = vrot.lane.b32.xlu0 %v662, 88
  %v666 = vpop.permute.xlu0 %665
  %v668 = vmul.f32 %v660, %v666
  %670 = vrot.lane.b32.xlu0 %v668, 20
  %v671 = vpop.permute.xlu0 %670
  %v673 = vadd.f32 %v663, %v671
  %v674 = vtanh.pop %v673
  %676 = vrot.lane.b32.xlu0 %v674, 40
  %v677 = vpop.permute.xlu0 %676
  %v679 = vmul.f32 %v660, %v677
  %681 = vrot.lane.b32.xlu0 %v679, 58
  %v682 = vpop.permute.xlu0 %681
  %684 = vst.msk [vmem:[#allocation2 + $0x58] sm:$0xff] %vm109, %v682
  %v685 = vld [vmem:[#allocation2] sm:$0xff]
  %v686 = vld [vmem:[#allocation2 + $0x8] sm:$0xff]
  %v687 = vld [vmem:[#allocation2 + $0x10] sm:$0xff]
  %v688 = vld [vmem:[#allocation2 + $0x18] sm:$0xff]
  %v689 = vld [vmem:[#allocation2 + $0x20] sm:$0xff]
  %v690 = vld [vmem:[#allocation2 + $0x28] sm:$0xff]
  %v691 = vld [vmem:[#allocation2 + $0x30] sm:$0xff]
  %v692 = vld [vmem:[#allocation2 + $0x38] sm:$0xff]
  %v693 = vld [vmem:[#allocation2 + $0x40] sm:$0xff]
  %v694 = vld [vmem:[#allocation2 + $0x48] sm:$0xff]
  %v695 = vld [vmem:[#allocation2 + $0x50] sm:$0xff]
  %v696 = vld [vmem:[#allocation2 + $0x58] sm:$0xff]
  %v697 = vld [vmem:[#allocation2 + $0x60] sm:$0xff]
  %v698 = vld [vmem:[#allocation2 + $0x68] sm:$0xff]
  %v699 = vld [vmem:[#allocation2 + $0x70] sm:$0xff]
  %v700 = vld [vmem:[#allocation2 + $0x78] sm:$0xff]
  %709 = vrot.lane.b32.xlu0 %v686, 10
  %v710 = vpop.permute.xlu0 %709
  %711 = vrot.lane.b32.xlu0 %v687, 10
  %v712 = vpop.permute.xlu0 %711
  %713 = vrot.lane.b32.xlu0 %v688, 10
  %v714 = vpop.permute.xlu0 %713
  %715 = vrot.lane.b32.xlu0 %v689, 10
  %v716 = vpop.permute.xlu0 %715
  %717 = vrot.lane.b32.xlu0 %v690, 10
  %v718 = vpop.permute.xlu0 %717
  %719 = vrot.lane.b32.xlu0 %v691, 10
  %v720 = vpop.permute.xlu0 %719
  %721 = vrot.lane.b32.xlu0 %v692, 10
  %v722 = vpop.permute.xlu0 %721
  %723 = vrot.lane.b32.xlu0 %v693, 10
  %v724 = vpop.permute.xlu0 %723
  %734 = vrot.lane.b32.xlu0 %v687, 20
  %v735 = vpop.permute.xlu0 %734
  %736 = vrot.lane.b32.xlu0 %v688, 20
  %v737 = vpop.permute.xlu0 %736
  %738 = vrot.lane.b32.xlu0 %v689, 20
  %v739 = vpop.permute.xlu0 %738
  %740 = vrot.lane.b32.xlu0 %v690, 20
  %v741 = vpop.permute.xlu0 %740
  %742 = vrot.lane.b32.xlu0 %v691, 20
  %v743 = vpop.permute.xlu0 %742
  %744 = vrot.lane.b32.xlu0 %v692, 20
  %v745 = vpop.permute.xlu0 %744
  %746 = vrot.lane.b32.xlu0 %v693, 20
  %v747 = vpop.permute.xlu0 %746
  %748 = vrot.lane.b32.xlu0 %v694, 20
  %v749 = vpop.permute.xlu0 %748
  %759 = vrot.lane.b32.xlu0 %v688, 30
  %v760 = vpop.permute.xlu0 %759
  %761 = vrot.lane.b32.xlu0 %v689, 30
  %v762 = vpop.permute.xlu0 %761
  %763 = vrot.lane.b32.xlu0 %v690, 30
  %v764 = vpop.permute.xlu0 %763
  %765 = vrot.lane.b32.xlu0 %v691, 30
  %v766 = vpop.permute.xlu0 %765
  %767 = vrot.lane.b32.xlu0 %v692, 30
  %v768 = vpop.permute.xlu0 %767
  %769 = vrot.lane.b32.xlu0 %v693, 30
  %v770 = vpop.permute.xlu0 %769
  %771 = vrot.lane.b32.xlu0 %v694, 30
  %v772 = vpop.permute.xlu0 %771
  %773 = vrot.lane.b32.xlu0 %v695, 30
  %v774 = vpop.permute.xlu0 %773
  %784 = vrot.lane.b32.xlu0 %v689, 40
  %v785 = vpop.permute.xlu0 %784
  %786 = vrot.lane.b32.xlu0 %v690, 40
  %v787 = vpop.permute.xlu0 %786
  %788 = vrot.lane.b32.xlu0 %v691, 40
  %v789 = vpop.permute.xlu0 %788
  %790 = vrot.lane.b32.xlu0 %v692, 40
  %v791 = vpop.permute.xlu0 %790
  %792 = vrot.lane.b32.xlu0 %v693, 40
  %v793 = vpop.permute.xlu0 %792
  %794 = vrot.lane.b32.xlu0 %v694, 40
  %v795 = vpop.permute.xlu0 %794
  %796 = vrot.lane.b32.xlu0 %v695, 40
  %v797 = vpop.permute.xlu0 %796
  %798 = vrot.lane.b32.xlu0 %v696, 40
  %v799 = vpop.permute.xlu0 %798
  %809 = vrot.lane.b32.xlu0 %v690, 50
  %v810 = vpop.permute.xlu0 %809
  %811 = vrot.lane.b32.xlu0 %v691, 50
  %v812 = vpop.permute.xlu0 %811
  %813 = vrot.lane.b32.xlu0 %v692, 50
  %v814 = vpop.permute.xlu0 %813
  %815 = vrot.lane.b32.xlu0 %v693, 50
  %v816 = vpop.permute.xlu0 %815
  %817 = vrot.lane.b32.xlu0 %v694, 50
  %v818 = vpop.permute.xlu0 %817
  %819 = vrot.lane.b32.xlu0 %v695, 50
  %v820 = vpop.permute.xlu0 %819
  %821 = vrot.lane.b32.xlu0 %v696, 50
  %v822 = vpop.permute.xlu0 %821
  %823 = vrot.lane.b32.xlu0 %v697, 50
  %v824 = vpop.permute.xlu0 %823
  %834 = vrot.lane.b32.xlu0 %v691, 60
  %v835 = vpop.permute.xlu0 %834
  %836 = vrot.lane.b32.xlu0 %v692, 60
  %v837 = vpop.permute.xlu0 %836
  %838 = vrot.lane.b32.xlu0 %v693, 60
  %v839 = vpop.permute.xlu0 %838
  %840 = vrot.lane.b32.xlu0 %v694, 60
  %v841 = vpop.permute.xlu0 %840
  %842 = vrot.lane.b32.xlu0 %v695, 60
  %v843 = vpop.permute.xlu0 %842
  %844 = vrot.lane.b32.xlu0 %v696, 60
  %v845 = vpop.permute.xlu0 %844
  %846 = vrot.lane.b32.xlu0 %v697, 60
  %v847 = vpop.permute.xlu0 %846
  %848 = vrot.lane.b32.xlu0 %v698, 60
  %v849 = vpop.permute.xlu0 %848
  %859 = vrot.lane.b32.xlu0 %v692, 70
  %v860 = vpop.permute.xlu0 %859
  %861 = vrot.lane.b32.xlu0 %v693, 70
  %v862 = vpop.permute.xlu0 %861
  %863 = vrot.lane.b32.xlu0 %v694, 70
  %v864 = vpop.permute.xlu0 %863
  %865 = vrot.lane.b32.xlu0 %v695, 70
  %v866 = vpop.permute.xlu0 %865
  %867 = vrot.lane.b32.xlu0 %v696, 70
  %v868 = vpop.permute.xlu0 %867
  %869 = vrot.lane.b32.xlu0 %v697, 70
  %v870 = vpop.permute.xlu0 %869
  %871 = vrot.lane.b32.xlu0 %v698, 70
  %v872 = vpop.permute.xlu0 %871
  %873 = vrot.lane.b32.xlu0 %v699, 70
  %v874 = vpop.permute.xlu0 %873
  %884 = vrot.lane.b32.xlu0 %v693, 80
  %v885 = vpop.permute.xlu0 %884
  %886 = vrot.lane.b32.xlu0 %v694, 80
  %v887 = vpop.permute.xlu0 %886
  %888 = vrot.lane.b32.xlu0 %v695, 80
  %v889 = vpop.permute.xlu0 %888
  %890 = vrot.lane.b32.xlu0 %v696, 80
  %v891 = vpop.permute.xlu0 %890
  %892 = vrot.lane.b32.xlu0 %v697, 80
  %v893 = vpop.permute.xlu0 %892
  %894 = vrot.lane.b32.xlu0 %v698, 80
  %v895 = vpop.permute.xlu0 %894
  %896 = vrot.lane.b32.xlu0 %v699, 80
  %v897 = vpop.permute.xlu0 %896
  %898 = vrot.lane.b32.xlu0 %v700, 80
  %v899 = vpop.permute.xlu0 %898
  %v908 = vsel %vm109, %v685, %v710
  %v909 = vsel %vm109, %v686, %v712
  %v910 = vsel %vm109, %v687, %v714
  %v911 = vsel %vm109, %v688, %v716
  %v912 = vsel %vm109, %v689, %v718
  %v913 = vsel %vm109, %v690, %v720
  %v914 = vsel %vm109, %v691, %v722
  %v915 = vsel %vm109, %v692, %v724
  %v916 = vsel %vm173, %v908, %v735
  %v917 = vsel %vm173, %v909, %v737
  %v918 = vsel %vm173, %v910, %v739
  %v919 = vsel %vm173, %v911, %v741
  %v920 = vsel %vm173, %v912, %v743
  %v921 = vsel %vm173, %v913, %v745
  %v922 = vsel %vm173, %v914, %v747
  %v923 = vsel %vm173, %v915, %v749
  %vm924 = vcmask 244736
  %v925 = vsel %vm924, %v916, %v760
  %v926 = vsel %vm924, %v917, %v762
  %v927 = vsel %vm924, %v918, %v764
  %v928 = vsel %vm924, %v919, %v766
  %v929 = vsel %vm924, %v920, %v768
  %v930 = vsel %vm924, %v921, %v770
  %v931 = vsel %vm924, %v922, %v772
  %v932 = vsel %vm924, %v923, %v774
  %vm933 = vcmask 326656
  %v934 = vsel %vm933, %v925, %v785
  %v935 = vsel %vm933, %v926, %v787
  %v936 = vsel %vm933, %v927, %v789
  %v937 = vsel %vm933, %v928, %v791
  %v938 = vsel %vm933, %v929, %v793
  %v939 = vsel %vm933, %v930, %v795
  %v940 = vsel %vm933, %v931, %v797
  %v941 = vsel %vm933, %v932, %v799
  %vm942 = vcmask 408576
  %v943 = vsel %vm942, %v934, %v810
  %v944 = vsel %vm942, %v935, %v812
  %v945 = vsel %vm942, %v936, %v814
  %v946 = vsel %vm942, %v937, %v816
  %v947 = vsel %vm942, %v938, %v818
  %v948 = vsel %vm942, %v939, %v820
  %v949 = vsel %vm942, %v940, %v822
  %v950 = vsel %vm942, %v941, %v824
  %vm951 = vcmask 490496
  %v952 = vsel %vm951, %v943, %v835
  %v953 = vsel %vm951, %v944, %v837
  %v954 = vsel %vm951, %v945, %v839
  %v955 = vsel %vm951, %v946, %v841
  %v956 = vsel %vm951, %v947, %v843
  %v957 = vsel %vm951, %v948, %v845
  %v958 = vsel %vm951, %v949, %v847
  %v959 = vsel %vm951, %v950, %v849
  %vm960 = vcmask 572416
  %v961 = vsel %vm960, %v952, %v860
  %v962 = vsel %vm960, %v953, %v862
  %v963 = vsel %vm960, %v954, %v864
  %v964 = vsel %vm960, %v955, %v866
  %v965 = vsel %vm960, %v956, %v868
  %v966 = vsel %vm960, %v957, %v870
  %v967 = vsel %vm960, %v958, %v872
  %v968 = vsel %vm960, %v959, %v874
  %vm969 = vcmask 654336
  %v970 = vsel %vm969, %v961, %v885
  %v971 = vsel %vm969, %v962, %v887
  %v972 = vsel %vm969, %v963, %v889
  %v973 = vsel %vm969, %v964, %v891
  %v974 = vsel %vm969, %v965, %v893
  %v975 = vsel %vm969, %v966, %v895
  %v976 = vsel %vm969, %v967, %v897
  %v977 = vsel %vm969, %v968, %v899
  %v978 = vld [vmem:[%s5] sm:$0xff]
  %v979 = vld [vmem:[%s5 + $0x8] sm:$0xff]
  %v980 = vld [vmem:[%s5 + $0x10] sm:$0xff]
  %v981 = vld [vmem:[%s5 + $0x18] sm:$0xff]
  %v982 = vld [vmem:[%s5 + $0x20] sm:$0xff]
  %v983 = vld [vmem:[%s5 + $0x28] sm:$0xff]
  %v984 = vld [vmem:[%s5 + $0x30] sm:$0xff]
  %v985 = vld [vmem:[%s5 + $0x38] sm:$0xff]
  %v986 = vld [vmem:[%s5 + $0x40] sm:$0xff]
  %v987 = vld [vmem:[%s5 + $0x48] sm:$0xff]
  %v988 = vld [vmem:[%s5 + $0x50] sm:$0xff]
  %v989 = vld [vmem:[%s5 + $0x58] sm:$0x3]
  %v990 = vld [vmem:[%s6] sm:$0x1]
  %v992 = vperm.slane %v990, 0
  %vm994 = vcmask 736256
  %v996 = vsel %vm994, %v970, 0
  %v999 = vsel %vm994, %v971, 0
  %v1002 = vsel %vm994, %v972, 0
  %v1005 = vsel %vm994, %v973, 0
  %v1008 = vsel %vm994, %v974, 0
  %v1011 = vsel %vm994, %v975, 0
  %v1014 = vsel %vm994, %v976, 0
  %v1017 = vsel %vm994, %v977, 0
  %v1020 = vsel %vm72, %v989, 0
  %1022 = vmatpush.msra.mxu0 0.0
  %1023 = vmatpush.msra.mxu0 0.0
  %1024 = vmatpush.msra.mxu0 0.0
  %1025 = vmatpush.msra.mxu0 0.0
  %1026 = vmatpush.msra.mxu0 %v1020
  %1027 = vmatpush.msra.mxu0 %v988
  %1028 = vmatpush.msra.mxu0 %v987
  %1029 = vmatpush.msra.mxu0 %v986
  %1030 = vmatpush.msra.mxu0 %v985
  %1031 = vmatpush.msra.mxu0 %v984
  %1032 = vmatpush.msra.mxu0 %v983
  %1033 = vmatpush.msra.mxu0 %v982
  %1034 = vmatpush.msra.mxu0 %v981
  %1035 = vmatpush.msra.mxu0 %v980
  %1036 = vmatpush.msra.mxu0 %v979
  %1037 = vmatpush.msra.mxu0 %v978
  %1038 = vmatmul.f32.gmra.mxu0 %v996
  %v1039 = vpop.f32.mrf.mxu0
  %v1040 = vadd.f32 %v992, %v1039
  %1041 = vmatmul.f32.gmra.mxu0 %v999
  %v1042 = vpop.f32.mrf.mxu0
  %v1043 = vadd.f32 %v992, %v1042
  %1044 = vmatmul.f32.gmra.mxu0 %v1002
  %v1045 = vpop.f32.mrf.mxu0
  %v1046 = vadd.f32 %v992, %v1045
  %1047 = vmatmul.f32.gmra.mxu0 %v1005
  %v1048 = vpop.f32.mrf.mxu0
  %v1049 = vadd.f32 %v992, %v1048
  %1050 = vmatmul.f32.gmra.mxu0 %v1008
  %v1051 = vpop.f32.mrf.mxu0
  %v1052 = vadd.f32 %v992, %v1051
  %1053 = vmatmul.f32.gmra.mxu0 %v1011
  %v1054 = vpop.f32.mrf.mxu0
  %v1055 = vadd.f32 %v992, %v1054
  %1056 = vmatmul.f32.gmra.mxu0 %v1014
  %v1057 = vpop.f32.mrf.mxu0
  %v1058 = vadd.f32 %v992, %v1057
  %1059 = vmatmul.f32.gmra.mxu0 %v1017
  %v1060 = vpop.f32.mrf.mxu0
  %v1061 = vadd.f32 %v992, %v1060
  %1062 = vdwg.mxu0
  %v1063 = vmax.f32 %v1040, 0.0
  %v1064 = vmax.f32 %v1043, 0.0
  %v1065 = vmax.f32 %v1046, 0.0
  %v1066 = vmax.f32 %v1049, 0.0
  %v1067 = vmax.f32 %v1052, 0.0
  %v1068 = vmax.f32 %v1055, 0.0
  %v1069 = vmax.f32 %v1058, 0.0
  %v1070 = vmax.f32 %v1061, 0.0
  %v1071 = vld [vmem:[%s7] sm:$0xff]
  %v1072 = vld [vmem:[%s7 + $0x8] sm:$0x3]
  %v1073 = vld [vmem:[%s8] sm:$0x1]
  %v1075 = vperm.slane %v1073, 0
  %v1078 = vsel %vm109, %v1063, 0
  %v1081 = vsel %vm109, %v1064, 0
  %v1084 = vsel %vm109, %v1065, 0
  %v1087 = vsel %vm109, %v1066, 0
  %v1090 = vsel %vm109, %v1067, 0
  %v1093 = vsel %vm109, %v1068, 0
  %v1096 = vsel %vm109, %v1069, 0
  %v1099 = vsel %vm109, %v1070, 0
  %v1102 = vsel %vm72, %v1072, 0
  %1104 = vmatpush.msra.mxu0 0.0
  %1105 = vmatpush.msra.mxu0 0.0
  %1106 = vmatpush.msra.mxu0 0.0
  %1107 = vmatpush.msra.mxu0 0.0
  %1108 = vmatpush.msra.mxu0 0.0
  %1109 = vmatpush.msra.mxu0 0.0
  %1110 = vmatpush.msra.mxu0 0.0
  %1111 = vmatpush.msra.mxu0 0.0
  %1112 = vmatpush.msra.mxu0 0.0
  %1113 = vmatpush.msra.mxu0 0.0
  %1114 = vmatpush.msra.mxu0 0.0
  %1115 = vmatpush.msra.mxu0 0.0
  %1116 = vmatpush.msra.mxu0 0.0
  %1117 = vmatpush.msra.mxu0 0.0
  %1118 = vmatpush.msra.mxu0 %v1102
  %1119 = vmatpush.msra.mxu0 %v1071
  %1120 = vmatmul.f32.gmra.mxu0 %v1078
  %v1121 = vpop.f32.mrf.mxu0
  %v1122 = vadd.f32 %v1075, %v1121
  %1123 = vmatmul.f32.gmra.mxu0 %v1081
  %v1124 = vpop.f32.mrf.mxu0
  %v1125 = vadd.f32 %v1075, %v1124
  %1126 = vmatmul.f32.gmra.mxu0 %v1084
  %v1127 = vpop.f32.mrf.mxu0
  %v1128 = vadd.f32 %v1075, %v1127
  %1129 = vmatmul.f32.gmra.mxu0 %v1087
  %v1130 = vpop.f32.mrf.mxu0
  %v1131 = vadd.f32 %v1075, %v1130
  %1132 = vmatmul.f32.gmra.mxu0 %v1090
  %v1133 = vpop.f32.mrf.mxu0
  %v1134 = vadd.f32 %v1075, %v1133
  %1135 = vmatmul.f32.gmra.mxu0 %v1093
  %v1136 = vpop.f32.mrf.mxu0
  %v1137 = vadd.f32 %v1075, %v1136
  %1138 = vmatmul.f32.gmra.mxu0 %v1096
  %v1139 = vpop.f32.mrf.mxu0
  %v1140 = vadd.f32 %v1075, %v1139
  %1141 = vmatmul.f32.gmra.mxu0 %v1099
  %v1142 = vpop.f32.mrf.mxu0
  %v1143 = vadd.f32 %v1075, %v1142
  %1144 = vdwg.mxu0
  %1145 = vst.msk [vmem:[%s9] sm:$0xff] %vm56, %v1122
  %1146 = vst.msk [vmem:[%s9 + $0x8] sm:$0xff] %vm56, %v1125
  %1147 = vst.msk [vmem:[%s9 + $0x10] sm:$0xff] %vm56, %v1128
  %1148 = vst.msk [vmem:[%s9 + $0x18] sm:$0xff] %vm56, %v1131
  %1149 = vst.msk [vmem:[%s9 + $0x20] sm:$0xff] %vm56, %v1134
  %1150 = vst.msk [vmem:[%s9 + $0x28] sm:$0xff] %vm56, %v1137
  %1151 = vst.msk [vmem:[%s9 + $0x30] sm:$0xff] %vm56, %v1140
  %1152 = vst.msk [vmem:[%s9 + $0x38] sm:$0xff] %vm56, %v1143
  // Predicated region
  $region38: #{tpu_custom_call.1} parent=0 // pred_check
    _
  $region39: #{tpu_custom_call.1} parent=0 // pred_check_branch
    %1154 = sbr.rel (0) target = $region41
  $region40: #{tpu_custom_call.1} parent=0 // pred_region
    _
  $region41: #{tpu_custom_call.1} parent=0 // pred_fallthru
    _
  // Predicated region
  $region42: #{tpu_custom_call.1} parent=0 // pred_check
    _
  $region43: #{tpu_custom_call.1} parent=0 // pred_check_branch
    %1156 = sbr.rel (0) target = $region45
  $region44: #{tpu_custom_call.1} parent=0 // pred_region
    _
  $region45: #{tpu_custom_call.1} parent=0 // pred_fallthru
    _

</llo_original>
